<compile_context>
chip_gen: v7x
topology: tpu7x:2x2x1
jax: 0.10.0
libtpu: 0.0.40
codegen_flags: <defaults>
</compile_context>

<pallas_src>
import functools

import jax
import jax.numpy as jnp
from jax import lax
from jax.experimental import pallas as pl
from jax.experimental.pallas import tpu as pltpu

EPS = 1e-12


# ----------------------------- Pallas kernel --------------------------------

def _spectral_conv_kernel(w2d_ref, w2dt_ref, wtap_ref, b_ref, mask_ref,
                          u_ref, v_ref, x_ref,
                          y_ref, u_out_ref, v_out_ref,
                          *, H, W, power_iterations):
    """Fused power iteration + 3x3 'same' conv for one batch element.

    w2d_ref  : (Cout, K)   f32  W_bar flattened in torch order (c, kh, kw)
    w2dt_ref : (K, Cout)   f32  transpose (avoids transposed dot_general in-kernel)
    wtap_ref : (9, Cout, C) f32 tap-major weight for the shifted-matmul conv
    b_ref    : (Cout, 1)   f32  bias column
    mask_ref : (9, 1, M)   f32  0/1 tap-validity mask in flattened (h*W+w) space
    u_ref    : (1, Cout)   f32  power-iteration state (row vectors)
    v_ref    : (1, K)      f32
    x_ref    : (1, C, M)        one image, channels x flattened pixels
    y_ref    : (1, Cout, M)     conv output (lane-dense)
    u_out_ref: (1, Cout), v_out_ref: (1, K)
    """
    eps = jnp.float32(EPS)

    # ---- power iteration on the tiny (Cout, K) weight.  Recomputed every grid
    # step (~600 FLOPs, free); keeps the whole forward in one pallas_call.
    w2d = w2d_ref[...]
    w2dt = w2dt_ref[...]
    u = u_ref[...]
    v = v_ref[...]
    for _ in range(power_iterations):
        vt = jnp.dot(u, w2d, preferred_element_type=jnp.float32)      # (1, K)   = W^T u
        v = vt / (jnp.sqrt(jnp.sum(vt * vt)) + eps)                   # torch l2normalize
        ut = jnp.dot(v, w2dt, preferred_element_type=jnp.float32)     # (1, Cout) = W v
        u = ut / (jnp.sqrt(jnp.sum(ut * ut)) + eps)
    if power_iterations >= 1:
        # sigma = u.(W v); after the last update W v == ut -> no extra matvec.
        sigma = jnp.sum(u * ut)
    else:  # not used by the module (power_iterations defaults to 1); kept for fidelity
        sigma = jnp.sum(u * jnp.dot(v, w2dt, preferred_element_type=jnp.float32))
    inv_sigma = 1.0 / sigma

    # Constant-index resident outputs; every grid step writes identical values.
    u_out_ref[...] = u
    v_out_ref[...] = v

    # ---- conv: 9 shifted matmuls accumulated in f32 (no materialized im2col).
    M = H * W
    xi = x_ref[0]                                  # (C, M) f32
    cout = w2d.shape[0]
    wtaps = wtap_ref[...] * inv_sigma              # fold 1/sigma into the weight (288 mults)
    acc = jnp.zeros((cout, M), jnp.float32)
    for t in range(9):                             # unrolled at trace time
        dy, dx = t // 3 - 1, t % 3 - 1
        s = dy * W + dx                            # flattened source offset: m -> m + s
        shifted = xi if s == 0 else pltpu.roll(xi, shift=(-s) % M, axis=1)
        shifted = shifted * mask_ref[t]            # (1, M) mask zeroes out-of-image taps
        acc = acc + jnp.dot(wtaps[t], shifted, preferred_element_type=jnp.float32)
    # f32 epilogue: bias add ((Cout,1) broadcast; negligible vs. the store traffic).
    y_ref[0] = (acc + b_ref[...]).astype(y_ref.dtype)


# ------------------------------ JAX wrapper ----------------------------------

def spectral_norm_conv_forward(x, w_bar, bias, u_row, v_row, power_iterations=1):
    """Full SpectralNorm(Conv2d(k=3, stride=1, pad=1)).forward(x).

    x: NCHW [N, C, H, W]; w_bar: OIHW [Cout, C, 3, 3]; bias: [Cout];
    u_row: [1, Cout]; v_row: [1, C*9].  Returns (y NCHW, u_new, v_new).
    """
    N, C, H, W = x.shape
    Cout, Cin, KH, KW = w_bar.shape
    assert Cin == C and KH == 3 and KW == 3
    K = C * KH * KW
    M = H * W

    # Tiny weight re-layouts done once in the wrapper (~1.2 KB tensor; free).
    w2d = w_bar.reshape(Cout, K).astype(jnp.float32)                  # torch flatten order
    w2dt = w2d.T                                                      # (K, Cout)
    w_taps = jnp.transpose(w_bar, (2, 3, 0, 1)).reshape(9, Cout, C).astype(jnp.float32)
    b_col = bias.reshape(Cout, 1).astype(jnp.float32)

    # 0/1 tap-validity masks in flattened (h*W + w) space: (9, 1, M), read once
    # (resident across the whole grid); replaces in-kernel integer div/mod.
    hh = jnp.arange(H, dtype=jnp.int32)
    ww = jnp.arange(W, dtype=jnp.int32)
    mask_list = []
    for dh in range(3):
        for dw in range(3):
            dy, dx = dh - 1, dw - 1
            mh = (hh + dy >= 0) & (hh + dy < H)
            mw = (ww + dx >= 0) & (ww + dx < W)
            mask_list.append((mh[:, None] & mw[None, :]).reshape(1, M))
    masks = jnp.stack(mask_list, axis=0).astype(jnp.float32)          # (9, 1, M)

    x_flat = x.reshape(N, C, M)     # contiguous metadata-only reshape (no copy pass)

    kernel = functools.partial(_spectral_conv_kernel, H=H, W=W,
                               power_iterations=power_iterations)
    y_flat, u_new, v_new = pl.pallas_call(
        kernel,
        grid=(N,),
        out_shape=(jax.ShapeDtypeStruct((N, Cout, M), x.dtype),
                   jax.ShapeDtypeStruct((1, Cout), jnp.float32),
                   jax.ShapeDtypeStruct((1, K), jnp.float32)),
        in_specs=[
            pl.BlockSpec((Cout, K), lambda n: (0, 0)),        # resident weight
            pl.BlockSpec((K, Cout), lambda n: (0, 0)),
            pl.BlockSpec((9, Cout, C), lambda n: (0, 0, 0)),  # tap-major weight
            pl.BlockSpec((Cout, 1), lambda n: (0, 0)),        # bias
            pl.BlockSpec((9, 1, M), lambda n: (0, 0, 0)),     # tap masks
            pl.BlockSpec((1, Cout), lambda n: (0, 0)),        # u
            pl.BlockSpec((1, K), lambda n: (0, 0)),           # v
            pl.BlockSpec((1, C, M), lambda n: (n, 0, 0)),     # x: one image per step
        ],
        out_specs=(
            pl.BlockSpec((1, Cout, M), lambda n: (n, 0, 0)),  # lane-dense output tile
            pl.BlockSpec((1, Cout), lambda n: (0, 0)),
            pl.BlockSpec((1, K), lambda n: (0, 0)),
        ),
        compiler_params=pltpu.CompilerParams(
            # batch axis parallel: shards across the 2 TensorCores on v7x
            # (harmless single-core loop on v5e/v6e).
            dimension_semantics=("parallel",)),
    )(w2d, w2dt, w_taps, b_col, masks,
      u_row.astype(jnp.float32), v_row.astype(jnp.float32), x_flat)

    # (N, Cout, H*W) -> NCHW is a contiguous reshape: no extra XLA transpose pass.
    return y_flat.reshape(N, Cout, H, W), u_new, v_new


# --------------------------------- main ---------------------------------------

def _l2normalize(v, eps=EPS):
    return v / (jnp.linalg.norm(v) + eps)


if __name__ == "__main__":
    key = jax.random.PRNGKey(0)
    k_x, k_w, k_b, k_u, k_v = jax.random.split(key, 5)

    N, Cin, H, W = 2, 4, 16, 16
    Cout, KH, KW = 8, 3, 3
    height = Cout
    width = Cin * KH * KW

    x = jax.random.normal(k_x, (N, Cin, H, W), dtype=jnp.float32)
    w_bar = jax.random.normal(k_w, (Cout, Cin, KH, KW), dtype=jnp.float32) * 0.1
    bias = jax.random.normal(k_b, (Cout,), dtype=jnp.float32) * 0.1
    u0 = _l2normalize(jax.random.normal(k_u, (height,), dtype=jnp.float32))
    v0 = _l2normalize(jax.random.normal(k_v, (width,), dtype=jnp.float32))

    fwd = jax.jit(spectral_norm_conv_forward, static_argnames=("power_iterations",))
    y, u_new, v_new = fwd(x, w_bar, bias,
                          u0.reshape(1, height), v0.reshape(1, width),
                          power_iterations=1)
    y = jax.block_until_ready(y)

    # Pure-JAX f32 reference (power iteration + conv).
    w2d = w_bar.reshape(height, width)
    v_ref = _l2normalize(w2d.T @ u0)
    u_ref = _l2normalize(w2d @ v_ref)
    sigma = jnp.dot(u_ref, w2d @ v_ref)
    w_ref = (w2d / sigma).reshape(Cout, Cin, KH, KW)
    y_ref = lax.conv_general_dilated(
        x, w_ref, window_strides=(1, 1), padding="SAME",
        dimension_numbers=("NCHW", "OIHW", "NCHW")) + bias.reshape(1, Cout, 1, 1)

    # Both paths are f32; small differences come from matmul precision defaults.
    assert jnp.allclose(y, y_ref, rtol=2e-2, atol=2e-2), "conv output mismatch"
    assert jnp.allclose(u_new.reshape(-1), u_ref, rtol=1e-2, atol=3e-3), "u mismatch"
    assert jnp.allclose(v_new.reshape(-1), v_ref, rtol=1e-2, atol=3e-3), "v mismatch"

    print("KERNEL_OK")
</pallas_src>

<mosaic_0001>
module attributes {stable_mosaic.version = 11 : i64} {
  func.func @_spectral_conv_kernel(%arg0: i32, %arg1: memref<8x36xf32, #tpu.memory_space<vmem>>, %arg2: memref<36x8xf32, #tpu.memory_space<vmem>>, %arg3: memref<9x8x4xf32, #tpu.memory_space<vmem>>, %arg4: memref<8x1xf32, #tpu.memory_space<vmem>>, %arg5: memref<9x1x256xf32, #tpu.memory_space<vmem>>, %arg6: memref<1x8xf32, #tpu.memory_space<vmem>>, %arg7: memref<1x36xf32, #tpu.memory_space<vmem>>, %arg8: memref<1x4x256xf32, #tpu.memory_space<vmem>>, %arg9: memref<1x8x256xf32, #tpu.memory_space<vmem>>, %arg10: memref<1x8xf32, #tpu.memory_space<vmem>>, %arg11: memref<1x36xf32, #tpu.memory_space<vmem>>) attributes {dimension_semantics = [#tpu.dimension_semantics<parallel>], iteration_bounds = array<i64: 2>, scalar_prefetch = 0 : i64, scratch_operands = 0 : i64, tpu.core_type = #tpu.core_type<tc>, window_params = [{pipeline_mode = #tpu.pipeline_mode<synchronous>, transform_indices = @transform_0, window_bounds = array<i64: 8, 36>}, {pipeline_mode = #tpu.pipeline_mode<synchronous>, transform_indices = @transform_1, window_bounds = array<i64: 36, 8>}, {pipeline_mode = #tpu.pipeline_mode<synchronous>, transform_indices = @transform_2, window_bounds = array<i64: 9, 8, 4>}, {pipeline_mode = #tpu.pipeline_mode<synchronous>, transform_indices = @transform_3, window_bounds = array<i64: 8, 1>}, {pipeline_mode = #tpu.pipeline_mode<synchronous>, transform_indices = @transform_4, window_bounds = array<i64: 9, 1, 256>}, {pipeline_mode = #tpu.pipeline_mode<synchronous>, transform_indices = @transform_5, window_bounds = array<i64: 1, 8>}, {pipeline_mode = #tpu.pipeline_mode<synchronous>, transform_indices = @transform_6, window_bounds = array<i64: 1, 36>}, {transform_indices = @transform_7, window_bounds = array<i64: 1, 4, 256>}, {transform_indices = @transform_8, window_bounds = array<i64: 1, 8, 256>}, {pipeline_mode = #tpu.pipeline_mode<synchronous>, transform_indices = @transform_9, window_bounds = array<i64: 1, 8>}, {pipeline_mode = #tpu.pipeline_mode<synchronous>, transform_indices = @transform_10, window_bounds = array<i64: 1, 36>}]} {
    %c0 = arith.constant 0 : index
    %c0_0 = arith.constant 0 : index
    %0 = vector.load %arg1[%c0, %c0_0] : memref<8x36xf32, #tpu.memory_space<vmem>>, vector<8x36xf32>
    %c0_1 = arith.constant 0 : index
    %c0_2 = arith.constant 0 : index
    %1 = vector.load %arg2[%c0_1, %c0_2] : memref<36x8xf32, #tpu.memory_space<vmem>>, vector<36x8xf32>
    %c0_3 = arith.constant 0 : index
    %c0_4 = arith.constant 0 : index
    %2 = vector.load %arg6[%c0_3, %c0_4] : memref<1x8xf32, #tpu.memory_space<vmem>>, vector<1x8xf32>
    %cst = arith.constant dense<0.000000e+00> : vector<1x36xf32>
    %3 = tpu.matmul %2, %0, %cst {dimension_numbers = #tpu.dot_dimension_numbers<[1], [0], [0], [1], [0, 0, 1, 1], [], []>} : vector<1x8xf32>, vector<8x36xf32>, vector<1x36xf32> -> vector<1x36xf32>
    %4 = arith.mulf %3, %3 : vector<1x36xf32>
    %5 = vector.shape_cast %4 : vector<1x36xf32> to vector<1x1x36xf32>
    %cst_5 = arith.constant dense<0.000000e+00> : vector<1xf32>
    %6 = vector.multi_reduction <add>, %5, %cst_5 [1, 2] : vector<1x1x36xf32> to vector<1xf32>
    %7 = vector.shape_cast %6 : vector<1xf32> to vector<1x1x1xf32>
    %8 = vector.extract %7[0, 0, 0] : f32 from vector<1x1x1xf32>
    %9 = math.sqrt %8 : f32
    %cst_6 = arith.constant 9.99999996E-13 : f32
    %10 = arith.addf %9, %cst_6 : f32
    %11 = vector.broadcast %10 : f32 to vector<1x36xf32>
    %12 = arith.divf %3, %11 : vector<1x36xf32>
    %cst_7 = arith.constant dense<0.000000e+00> : vector<1x8xf32>
    %13 = tpu.matmul %12, %1, %cst_7 {dimension_numbers = #tpu.dot_dimension_numbers<[1], [0], [0], [1], [0, 0, 1, 1], [], []>} : vector<1x36xf32>, vector<36x8xf32>, vector<1x8xf32> -> vector<1x8xf32>
    %14 = arith.mulf %13, %13 : vector<1x8xf32>
    %15 = vector.shape_cast %14 : vector<1x8xf32> to vector<1x1x8xf32>
    %cst_8 = arith.constant dense<0.000000e+00> : vector<1xf32>
    %16 = vector.multi_reduction <add>, %15, %cst_8 [1, 2] : vector<1x1x8xf32> to vector<1xf32>
    %17 = vector.shape_cast %16 : vector<1xf32> to vector<1x1x1xf32>
    %18 = vector.extract %17[0, 0, 0] : f32 from vector<1x1x1xf32>
    %19 = math.sqrt %18 : f32
    %cst_9 = arith.constant 9.99999996E-13 : f32
    %20 = arith.addf %19, %cst_9 : f32
    %21 = vector.broadcast %20 : f32 to vector<1x8xf32>
    %22 = arith.divf %13, %21 : vector<1x8xf32>
    %23 = arith.mulf %22, %13 : vector<1x8xf32>
    %24 = vector.shape_cast %23 : vector<1x8xf32> to vector<1x1x8xf32>
    %cst_10 = arith.constant dense<0.000000e+00> : vector<1xf32>
    %25 = vector.multi_reduction <add>, %24, %cst_10 [1, 2] : vector<1x1x8xf32> to vector<1xf32>
    %26 = vector.shape_cast %25 : vector<1xf32> to vector<1x1x1xf32>
    %27 = vector.extract %26[0, 0, 0] : f32 from vector<1x1x1xf32>
    %cst_11 = arith.constant 1.000000e+00 : f32
    %28 = arith.divf %cst_11, %27 : f32
    %c0_12 = arith.constant 0 : index
    %c0_13 = arith.constant 0 : index
    %29 = vector.load %arg10[%c0_12, %c0_13] : memref<1x8xf32, #tpu.memory_space<vmem>>, vector<1x8xf32>
    tpu.vector_store %arg10[%c0_12, %c0_13], %22 {strides = array<i32>} : memref<1x8xf32, #tpu.memory_space<vmem>>, vector<1x8xf32>,
    %c0_14 = arith.constant 0 : index
    %c0_15 = arith.constant 0 : index
    %30 = vector.load %arg11[%c0_14, %c0_15] : memref<1x36xf32, #tpu.memory_space<vmem>>, vector<1x36xf32>
    tpu.vector_store %arg11[%c0_14, %c0_15], %12 {strides = array<i32>} : memref<1x36xf32, #tpu.memory_space<vmem>>, vector<1x36xf32>,
    %c0_16 = arith.constant 0 : index
    %c0_17 = arith.constant 0 : index
    %c0_18 = arith.constant 0 : index
    %31 = vector.load %arg8[%c0_16, %c0_17, %c0_18] : memref<1x4x256xf32, #tpu.memory_space<vmem>>, vector<1x4x256xf32>
    %32 = vector.shape_cast %31 : vector<1x4x256xf32> to vector<4x256xf32>
    %c0_19 = arith.constant 0 : index
    %c0_20 = arith.constant 0 : index
    %c0_21 = arith.constant 0 : index
    %33 = vector.load %arg3[%c0_19, %c0_20, %c0_21] : memref<9x8x4xf32, #tpu.memory_space<vmem>>, vector<9x8x4xf32>
    %34 = vector.broadcast %28 : f32 to vector<9x8x4xf32>
    %35 = arith.mulf %33, %34 : vector<9x8x4xf32>
    %cst_22 = arith.constant 0.000000e+00 : f32
    %36 = vector.broadcast %cst_22 : f32 to vector<8x256xf32>
    %c17_i32 = arith.constant 17 : i32
    %37 = tpu.dynamic_rotate %32 by %c17_i32 dim 1 : vector<4x256xf32>, i32 -> vector<4x256xf32>
    %c0_23 = arith.constant 0 : index
    %c0_24 = arith.constant 0 : index
    %c0_25 = arith.constant 0 : index
    %38 = vector.load %arg5[%c0_23, %c0_24, %c0_25] : memref<9x1x256xf32, #tpu.memory_space<vmem>>, vector<1x1x256xf32>
    %39 = vector.shape_cast %38 : vector<1x1x256xf32> to vector<1x256xf32>
    %40 = vector.broadcast %39 : vector<1x256xf32> to vector<4x256xf32>
    %41 = arith.mulf %37, %40 : vector<4x256xf32>
    %42 = vector.extract_strided_slice %35 {offsets = [0, 0, 0], sizes = [1, 8, 4], strides = [1, 1, 1]} : vector<9x8x4xf32> to vector<1x8x4xf32>
    %43 = vector.shape_cast %42 : vector<1x8x4xf32> to vector<8x4xf32>
    %cst_26 = arith.constant dense<0.000000e+00> : vector<8x256xf32>
    %44 = tpu.matmul %43, %41, %cst_26 {dimension_numbers = #tpu.dot_dimension_numbers<[1], [0], [0], [1], [0, 0, 1, 1], [], []>} : vector<8x4xf32>, vector<4x256xf32>, vector<8x256xf32> -> vector<8x256xf32>
    %45 = arith.addf %36, %44 : vector<8x256xf32>
    %c16_i32 = arith.constant 16 : i32
    %46 = tpu.dynamic_rotate %32 by %c16_i32 dim 1 : vector<4x256xf32>, i32 -> vector<4x256xf32>
    %c1 = arith.constant 1 : index
    %c0_27 = arith.constant 0 : index
    %c0_28 = arith.constant 0 : index
    %47 = vector.load %arg5[%c1, %c0_27, %c0_28] : memref<9x1x256xf32, #tpu.memory_space<vmem>>, vector<1x1x256xf32>
    %48 = vector.shape_cast %47 : vector<1x1x256xf32> to vector<1x256xf32>
    %49 = vector.broadcast %48 : vector<1x256xf32> to vector<4x256xf32>
    %50 = arith.mulf %46, %49 : vector<4x256xf32>
    %51 = vector.extract_strided_slice %35 {offsets = [1, 0, 0], sizes = [1, 8, 4], strides = [1, 1, 1]} : vector<9x8x4xf32> to vector<1x8x4xf32>
    %52 = vector.shape_cast %51 : vector<1x8x4xf32> to vector<8x4xf32>
    %cst_29 = arith.constant dense<0.000000e+00> : vector<8x256xf32>
    %53 = tpu.matmul %52, %50, %cst_29 {dimension_numbers = #tpu.dot_dimension_numbers<[1], [0], [0], [1], [0, 0, 1, 1], [], []>} : vector<8x4xf32>, vector<4x256xf32>, vector<8x256xf32> -> vector<8x256xf32>
    %54 = arith.addf %45, %53 : vector<8x256xf32>
    %c15_i32 = arith.constant 15 : i32
    %55 = tpu.dynamic_rotate %32 by %c15_i32 dim 1 : vector<4x256xf32>, i32 -> vector<4x256xf32>
    %c2 = arith.constant 2 : index
    %c0_30 = arith.constant 0 : index
    %c0_31 = arith.constant 0 : index
    %56 = vector.load %arg5[%c2, %c0_30, %c0_31] : memref<9x1x256xf32, #tpu.memory_space<vmem>>, vector<1x1x256xf32>
    %57 = vector.shape_cast %56 : vector<1x1x256xf32> to vector<1x256xf32>
    %58 = vector.broadcast %57 : vector<1x256xf32> to vector<4x256xf32>
    %59 = arith.mulf %55, %58 : vector<4x256xf32>
    %60 = vector.extract_strided_slice %35 {offsets = [2, 0, 0], sizes = [1, 8, 4], strides = [1, 1, 1]} : vector<9x8x4xf32> to vector<1x8x4xf32>
    %61 = vector.shape_cast %60 : vector<1x8x4xf32> to vector<8x4xf32>
    %cst_32 = arith.constant dense<0.000000e+00> : vector<8x256xf32>
    %62 = tpu.matmul %61, %59, %cst_32 {dimension_numbers = #tpu.dot_dimension_numbers<[1], [0], [0], [1], [0, 0, 1, 1], [], []>} : vector<8x4xf32>, vector<4x256xf32>, vector<8x256xf32> -> vector<8x256xf32>
    %63 = arith.addf %54, %62 : vector<8x256xf32>
    %c1_i32 = arith.constant 1 : i32
    %64 = tpu.dynamic_rotate %32 by %c1_i32 dim 1 : vector<4x256xf32>, i32 -> vector<4x256xf32>
    %c3 = arith.constant 3 : index
    %c0_33 = arith.constant 0 : index
    %c0_34 = arith.constant 0 : index
    %65 = vector.load %arg5[%c3, %c0_33, %c0_34] : memref<9x1x256xf32, #tpu.memory_space<vmem>>, vector<1x1x256xf32>
    %66 = vector.shape_cast %65 : vector<1x1x256xf32> to vector<1x256xf32>
    %67 = vector.broadcast %66 : vector<1x256xf32> to vector<4x256xf32>
    %68 = arith.mulf %64, %67 : vector<4x256xf32>
    %69 = vector.extract_strided_slice %35 {offsets = [3, 0, 0], sizes = [1, 8, 4], strides = [1, 1, 1]} : vector<9x8x4xf32> to vector<1x8x4xf32>
    %70 = vector.shape_cast %69 : vector<1x8x4xf32> to vector<8x4xf32>
    %cst_35 = arith.constant dense<0.000000e+00> : vector<8x256xf32>
    %71 = tpu.matmul %70, %68, %cst_35 {dimension_numbers = #tpu.dot_dimension_numbers<[1], [0], [0], [1], [0, 0, 1, 1], [], []>} : vector<8x4xf32>, vector<4x256xf32>, vector<8x256xf32> -> vector<8x256xf32>
    %72 = arith.addf %63, %71 : vector<8x256xf32>
    %c4 = arith.constant 4 : index
    %c0_36 = arith.constant 0 : index
    %c0_37 = arith.constant 0 : index
    %73 = vector.load %arg5[%c4, %c0_36, %c0_37] : memref<9x1x256xf32, #tpu.memory_space<vmem>>, vector<1x1x256xf32>
    %74 = vector.shape_cast %73 : vector<1x1x256xf32> to vector<1x256xf32>
    %75 = vector.broadcast %74 : vector<1x256xf32> to vector<4x256xf32>
    %76 = arith.mulf %32, %75 : vector<4x256xf32>
    %77 = vector.extract_strided_slice %35 {offsets = [4, 0, 0], sizes = [1, 8, 4], strides = [1, 1, 1]} : vector<9x8x4xf32> to vector<1x8x4xf32>
    %78 = vector.shape_cast %77 : vector<1x8x4xf32> to vector<8x4xf32>
    %cst_38 = arith.constant dense<0.000000e+00> : vector<8x256xf32>
    %79 = tpu.matmul %78, %76, %cst_38 {dimension_numbers = #tpu.dot_dimension_numbers<[1], [0], [0], [1], [0, 0, 1, 1], [], []>} : vector<8x4xf32>, vector<4x256xf32>, vector<8x256xf32> -> vector<8x256xf32>
    %80 = arith.addf %72, %79 : vector<8x256xf32>
    %c255_i32 = arith.constant 255 : i32
    %81 = tpu.dynamic_rotate %32 by %c255_i32 dim 1 : vector<4x256xf32>, i32 -> vector<4x256xf32>
    %c5 = arith.constant 5 : index
    %c0_39 = arith.constant 0 : index
    %c0_40 = arith.constant 0 : index
    %82 = vector.load %arg5[%c5, %c0_39, %c0_40] : memref<9x1x256xf32, #tpu.memory_space<vmem>>, vector<1x1x256xf32>
    %83 = vector.shape_cast %82 : vector<1x1x256xf32> to vector<1x256xf32>
    %84 = vector.broadcast %83 : vector<1x256xf32> to vector<4x256xf32>
    %85 = arith.mulf %81, %84 : vector<4x256xf32>
    %86 = vector.extract_strided_slice %35 {offsets = [5, 0, 0], sizes = [1, 8, 4], strides = [1, 1, 1]} : vector<9x8x4xf32> to vector<1x8x4xf32>
    %87 = vector.shape_cast %86 : vector<1x8x4xf32> to vector<8x4xf32>
    %cst_41 = arith.constant dense<0.000000e+00> : vector<8x256xf32>
    %88 = tpu.matmul %87, %85, %cst_41 {dimension_numbers = #tpu.dot_dimension_numbers<[1], [0], [0], [1], [0, 0, 1, 1], [], []>} : vector<8x4xf32>, vector<4x256xf32>, vector<8x256xf32> -> vector<8x256xf32>
    %89 = arith.addf %80, %88 : vector<8x256xf32>
    %c241_i32 = arith.constant 241 : i32
    %90 = tpu.dynamic_rotate %32 by %c241_i32 dim 1 : vector<4x256xf32>, i32 -> vector<4x256xf32>
    %c6 = arith.constant 6 : index
    %c0_42 = arith.constant 0 : index
    %c0_43 = arith.constant 0 : index
    %91 = vector.load %arg5[%c6, %c0_42, %c0_43] : memref<9x1x256xf32, #tpu.memory_space<vmem>>, vector<1x1x256xf32>
    %92 = vector.shape_cast %91 : vector<1x1x256xf32> to vector<1x256xf32>
    %93 = vector.broadcast %92 : vector<1x256xf32> to vector<4x256xf32>
    %94 = arith.mulf %90, %93 : vector<4x256xf32>
    %95 = vector.extract_strided_slice %35 {offsets = [6, 0, 0], sizes = [1, 8, 4], strides = [1, 1, 1]} : vector<9x8x4xf32> to vector<1x8x4xf32>
    %96 = vector.shape_cast %95 : vector<1x8x4xf32> to vector<8x4xf32>
    %cst_44 = arith.constant dense<0.000000e+00> : vector<8x256xf32>
    %97 = tpu.matmul %96, %94, %cst_44 {dimension_numbers = #tpu.dot_dimension_numbers<[1], [0], [0], [1], [0, 0, 1, 1], [], []>} : vector<8x4xf32>, vector<4x256xf32>, vector<8x256xf32> -> vector<8x256xf32>
    %98 = arith.addf %89, %97 : vector<8x256xf32>
    %c240_i32 = arith.constant 240 : i32
    %99 = tpu.dynamic_rotate %32 by %c240_i32 dim 1 : vector<4x256xf32>, i32 -> vector<4x256xf32>
    %c7 = arith.constant 7 : index
    %c0_45 = arith.constant 0 : index
    %c0_46 = arith.constant 0 : index
    %100 = vector.load %arg5[%c7, %c0_45, %c0_46] : memref<9x1x256xf32, #tpu.memory_space<vmem>>, vector<1x1x256xf32>
    %101 = vector.shape_cast %100 : vector<1x1x256xf32> to vector<1x256xf32>
    %102 = vector.broadcast %101 : vector<1x256xf32> to vector<4x256xf32>
    %103 = arith.mulf %99, %102 : vector<4x256xf32>
    %104 = vector.extract_strided_slice %35 {offsets = [7, 0, 0], sizes = [1, 8, 4], strides = [1, 1, 1]} : vector<9x8x4xf32> to vector<1x8x4xf32>
    %105 = vector.shape_cast %104 : vector<1x8x4xf32> to vector<8x4xf32>
    %cst_47 = arith.constant dense<0.000000e+00> : vector<8x256xf32>
    %106 = tpu.matmul %105, %103, %cst_47 {dimension_numbers = #tpu.dot_dimension_numbers<[1], [0], [0], [1], [0, 0, 1, 1], [], []>} : vector<8x4xf32>, vector<4x256xf32>, vector<8x256xf32> -> vector<8x256xf32>
    %107 = arith.addf %98, %106 : vector<8x256xf32>
    %c239_i32 = arith.constant 239 : i32
    %108 = tpu.dynamic_rotate %32 by %c239_i32 dim 1 : vector<4x256xf32>, i32 -> vector<4x256xf32>
    %c8 = arith.constant 8 : index
    %c0_48 = arith.constant 0 : index
    %c0_49 = arith.constant 0 : index
    %109 = vector.load %arg5[%c8, %c0_48, %c0_49] : memref<9x1x256xf32, #tpu.memory_space<vmem>>, vector<1x1x256xf32>
    %110 = vector.shape_cast %109 : vector<1x1x256xf32> to vector<1x256xf32>
    %111 = vector.broadcast %110 : vector<1x256xf32> to vector<4x256xf32>
    %112 = arith.mulf %108, %111 : vector<4x256xf32>
    %113 = vector.extract_strided_slice %35 {offsets = [8, 0, 0], sizes = [1, 8, 4], strides = [1, 1, 1]} : vector<9x8x4xf32> to vector<1x8x4xf32>
    %114 = vector.shape_cast %113 : vector<1x8x4xf32> to vector<8x4xf32>
    %cst_50 = arith.constant dense<0.000000e+00> : vector<8x256xf32>
    %115 = tpu.matmul %114, %112, %cst_50 {dimension_numbers = #tpu.dot_dimension_numbers<[1], [0], [0], [1], [0, 0, 1, 1], [], []>} : vector<8x4xf32>, vector<4x256xf32>, vector<8x256xf32> -> vector<8x256xf32>
    %116 = arith.addf %107, %115 : vector<8x256xf32>
    %c0_51 = arith.constant 0 : index
    %c0_52 = arith.constant 0 : index
    %117 = vector.load %arg4[%c0_51, %c0_52] : memref<8x1xf32, #tpu.memory_space<vmem>>, vector<8x1xf32>
    %118 = vector.broadcast %117 : vector<8x1xf32> to vector<8x256xf32>
    %119 = arith.addf %116, %118 : vector<8x256xf32>
    %c0_53 = arith.constant 0 : index
    %c0_54 = arith.constant 0 : index
    %c0_55 = arith.constant 0 : index
    %120 = vector.load %arg9[%c0_53, %c0_54, %c0_55] : memref<1x8x256xf32, #tpu.memory_space<vmem>>, vector<1x8x256xf32>
    %121 = vector.shape_cast %120 : vector<1x8x256xf32> to vector<8x256xf32>
    %122 = vector.shape_cast %119 : vector<8x256xf32> to vector<1x8x256xf32>
    tpu.vector_store %arg9[%c0_53, %c0_54, %c0_55], %122 {strides = array<i32>} : memref<1x8x256xf32, #tpu.memory_space<vmem>>, vector<1x8x256xf32>,
    return
  }
  func.func @transform_0(%arg0: i32) -> (i32, i32) {
    %c0_i32 = arith.constant 0 : i32
    %c0_i32_0 = arith.constant 0 : i32
    %c0_i32_1 = arith.constant 0 : i32
    return %c0_i32, %c0_i32_0 : i32, i32
  }
  func.func @transform_1(%arg0: i32) -> (i32, i32) {
    %c0_i32 = arith.constant 0 : i32
    %c0_i32_0 = arith.constant 0 : i32
    %c0_i32_1 = arith.constant 0 : i32
    return %c0_i32, %c0_i32_0 : i32, i32
  }
  func.func @transform_2(%arg0: i32) -> (i32, i32, i32) {
    %c0_i32 = arith.constant 0 : i32
    %c0_i32_0 = arith.constant 0 : i32
    %c0_i32_1 = arith.constant 0 : i32
    %c0_i32_2 = arith.constant 0 : i32
    return %c0_i32, %c0_i32_0, %c0_i32_1 : i32, i32, i32
  }
  func.func @transform_3(%arg0: i32) -> (i32, i32) {
    %c0_i32 = arith.constant 0 : i32
    %c0_i32_0 = arith.constant 0 : i32
    %c0_i32_1 = arith.constant 0 : i32
    return %c0_i32, %c0_i32_0 : i32, i32
  }
  func.func @transform_4(%arg0: i32) -> (i32, i32, i32) {
    %c0_i32 = arith.constant 0 : i32
    %c0_i32_0 = arith.constant 0 : i32
    %c0_i32_1 = arith.constant 0 : i32
    %c0_i32_2 = arith.constant 0 : i32
    return %c0_i32, %c0_i32_0, %c0_i32_1 : i32, i32, i32
  }
  func.func @transform_5(%arg0: i32) -> (i32, i32) {
    %c0_i32 = arith.constant 0 : i32
    %c0_i32_0 = arith.constant 0 : i32
    %c0_i32_1 = arith.constant 0 : i32
    return %c0_i32, %c0_i32_0 : i32, i32
  }
  func.func @transform_6(%arg0: i32) -> (i32, i32) {
    %c0_i32 = arith.constant 0 : i32
    %c0_i32_0 = arith.constant 0 : i32
    %c0_i32_1 = arith.constant 0 : i32
    return %c0_i32, %c0_i32_0 : i32, i32
  }
  func.func @transform_7(%arg0: i32) -> (i32, i32, i32) {
    %c0_i32 = arith.constant 0 : i32
    %c0_i32_0 = arith.constant 0 : i32
    %c0_i32_1 = arith.constant 0 : i32
    return %arg0, %c0_i32, %c0_i32_0 : i32, i32, i32
  }
  func.func @transform_8(%arg0: i32) -> (i32, i32, i32) {
    %c0_i32 = arith.constant 0 : i32
    %c0_i32_0 = arith.constant 0 : i32
    %c0_i32_1 = arith.constant 0 : i32
    return %arg0, %c0_i32, %c0_i32_0 : i32, i32, i32
  }
  func.func @transform_9(%arg0: i32) -> (i32, i32) {
    %c0_i32 = arith.constant 0 : i32
    %c0_i32_0 = arith.constant 0 : i32
    %c0_i32_1 = arith.constant 0 : i32
    return %c0_i32, %c0_i32_0 : i32, i32
  }
  func.func @transform_10(%arg0: i32) -> (i32, i32) {
    %c0_i32 = arith.constant 0 : i32
    %c0_i32_0 = arith.constant 0 : i32
    %c0_i32_1 = arith.constant 0 : i32
    return %c0_i32, %c0_i32_0 : i32, i32
  }
}

</mosaic_0001>

<llo_original>
// kernel: spectral_norm_conv_forward.1
$region0: #{spectral_norm_conv_forward.1}
  #allocation0 [shape = 'u32[]', space=smem, size = 0x4, offset = 0x4, fixed_abs, tag = 'smem constant byte address 0x4 - core index']
  #allocation1 [shape = 'u32[144,128]{1,0:T(1,128)}', space=vmem, size = 0x12000, scoped, tag = 'internal scratch']
  %s0 = inlined_call_operand.vmem [shape: f32[8,36], index: 0, kind: input, shape index: {}]
  %s1 = inlined_call_operand.vmem [shape: f32[36,8], index: 1, kind: input, shape index: {}]
  %s2 = inlined_call_operand.vmem [shape: f32[9,8,4], index: 2, kind: input, shape index: {}]
  %s3 = inlined_call_operand.vmem [shape: f32[8,1], index: 3, kind: input, shape index: {}]
  %s4 = inlined_call_operand.vmem [shape: f32[9,1,256], index: 4, kind: input, shape index: {}]
  %s5 = inlined_call_operand.vmem [shape: f32[1,8], index: 5, kind: input, shape index: {}]
  %s6 = inlined_call_operand.vmem [shape: f32[1,36], index: 6, kind: input, shape index: {}]
  %s7 = inlined_call_operand.vmem [shape: f32[2,4,256], index: 7, kind: input, shape index: {}]
  %s8 = inlined_call_operand.vmem [shape: f32[2,8,256], index: 8, kind: output, shape index: {0}]
  %s9 = inlined_call_operand.hbm [shape: f32[1,8], index: 9, kind: output, shape index: {1}]
  %s10 = inlined_call_operand.hbm [shape: f32[1,36], index: 10, kind: output, shape index: {2}]
  %11 = xla_tuple %s8, %s9, %s10
  %s12 = sld [smem:[#allocation0]]
  $region81: #{spectral_norm_conv_forward.1} parent=0
    _
  %s14 = ssub.s32 1, %s12
  %s15 = scalar_select 0, %s14, %s12
  $region1: #{spectral_norm_conv_forward.1} parent=0
    #allocation2 [shape = 'u8[512]{0}', space=vmem, size = 0x400, scoped, tag = 'output window, operand 1, single buffered']
    #allocation3 [shape = 's32[2]{0}', space=sflag, size = 0x8, scoped, tag = 'scoped memory for spectral_norm_conv_forward.1']
    #allocation4 [shape = 'u8[512]{0}', space=vmem, size = 0x400, scoped, tag = 'output window, operand 2, single buffered']
    #allocation5 [shape = 's32[1]{0}', space=sflag, size = 0x4, scoped, tag = 'scoped memory for spectral_norm_conv_forward.1']
    %16 = vsyncpa [#allocation3], 0
    %17 = vsyncpa [#allocation5], 0
    loop: start=0, step=1, limit=4
    $region2: #{spectral_norm_conv_forward.1} parent=1 // loop_pre_header
      _
    $region3: #{spectral_norm_conv_forward.1} parent=1 // loop_header
      %s19 = sphi 0, %s23
      %p20 = scmp.ge.s32.totalorder %s19, 4
      %s27 = sphi 0, %s27
      %s29 = sphi 0, %s27
      %s30 = sphi 0, %s29
      %s44 = sphi 0, %s30
      %s48 = sphi 0, %s48
      %s50 = sphi 0, %s48
      %s51 = sphi 0, %s50
      %s65 = sphi 0, %s51
      %s69 = sphi 0, %s69
      %s71 = sphi 0, %s69
      %s72 = sphi 0, %s71
      %s86 = sphi 0, %s72
      %s90 = sphi 0, %s90
      %s92 = sphi 0, %s90
      %s93 = sphi 0, %s92
      %s107 = sphi 0, %s93
      %s111 = sphi 0, %s111
      %s113 = sphi 0, %s111
      %s114 = sphi 0, %s113
      %s128 = sphi 0, %s114
      %s132 = sphi 0, %s132
      %s134 = sphi 0, %s132
      %s135 = sphi 0, %s134
      %s149 = sphi 0, %s135
      %s153 = sphi 0, %s153
      %s155 = sphi 0, %s153
      %s156 = sphi 0, %s155
      %s170 = sphi 0, %s156
      %s176 = sphi 0, %s178
      %s179 = sphi 0, %s176
      %s180 = sphi 0, %s179
      %s196 = sphi 0, %s180
      %s202 = sphi 0, %s204
      %s205 = sphi 0, %s202
      %s206 = sphi 0, %s205
      %s222 = sphi 0, %s206
      %s226 = sphi 0, %s226
      %s228 = sphi 0, %s226
      %s229 = sphi 0, %s228
      %s243 = sphi 0, %s229
      %s247 = sphi 0, %s247
      %s249 = sphi 0, %s247
      %s250 = sphi 0, %s249
      %s264 = sphi 0, %s250
    $region4: #{spectral_norm_conv_forward.1} parent=1 // loop_header_branch
      %22 = sbr.rel (%p20) target = $region8
    $region5: #{spectral_norm_conv_forward.1} parent=1 // loop_body
      %s24 = ssub.s32 %s19, 1
      %s25 = ssub.s32 %s19, 2
      %s26 = sadd.s32 %s19, 1
      %s28 = sadd.s32 %s27, 1
      %p31 = scmp.eq.s32.totalorder %s19, 1
      %p32 = scmp.ne.s32.totalorder %s27, %s29
      %p33 = scmp.eq.s32.totalorder %s19, 0
      %p34 = por %p32, %p33
      %p35 = scmp.ne.s32.totalorder %s27, %s29
      %p36 = scmp.eq.s32.totalorder %s24, 1
      %p37 = por %p35, %p36
      %p38 = scmp.ne.s32.totalorder %s29, %s30
      %p39 = scmp.eq.s32.totalorder %s24, 0
      %p40 = por %p38, %p39
      %p41 = scmp.ne.s32.totalorder %s29, %s30
      %p42 = scmp.eq.s32.totalorder %s25, 1
      %p43 = por %p41, %p42
      %p45 = scmp.ne.s32.totalorder %s30, %s44
      %p46 = scmp.eq.s32.totalorder %s25, 0
      %p47 = por %p45, %p46
      %s49 = sadd.s32 %s48, 1
      %p52 = scmp.eq.s32.totalorder %s19, 1
      %p53 = scmp.ne.s32.totalorder %s48, %s50
      %p54 = scmp.eq.s32.totalorder %s19, 0
      %p55 = por %p53, %p54
      %p56 = scmp.ne.s32.totalorder %s48, %s50
      %p57 = scmp.eq.s32.totalorder %s24, 1
      %p58 = por %p56, %p57
      %p59 = scmp.ne.s32.totalorder %s50, %s51
      %p60 = scmp.eq.s32.totalorder %s24, 0
      %p61 = por %p59, %p60
      %p62 = scmp.ne.s32.totalorder %s50, %s51
      %p63 = scmp.eq.s32.totalorder %s25, 1
      %p64 = por %p62, %p63
      %p66 = scmp.ne.s32.totalorder %s51, %s65
      %p67 = scmp.eq.s32.totalorder %s25, 0
      %p68 = por %p66, %p67
      %s70 = sadd.s32 %s69, 1
      %p73 = scmp.eq.s32.totalorder %s19, 1
      %p74 = scmp.ne.s32.totalorder %s69, %s71
      %p75 = scmp.eq.s32.totalorder %s19, 0
      %p76 = por %p74, %p75
      %p77 = scmp.ne.s32.totalorder %s69, %s71
      %p78 = scmp.eq.s32.totalorder %s24, 1
      %p79 = por %p77, %p78
      %p80 = scmp.ne.s32.totalorder %s71, %s72
      %p81 = scmp.eq.s32.totalorder %s24, 0
      %p82 = por %p80, %p81
      %p83 = scmp.ne.s32.totalorder %s71, %s72
      %p84 = scmp.eq.s32.totalorder %s25, 1
      %p85 = por %p83, %p84
      %p87 = scmp.ne.s32.totalorder %s72, %s86
      %p88 = scmp.eq.s32.totalorder %s25, 0
      %p89 = por %p87, %p88
      %s91 = sadd.s32 %s90, 1
      %p94 = scmp.eq.s32.totalorder %s19, 1
      %p95 = scmp.ne.s32.totalorder %s90, %s92
      %p96 = scmp.eq.s32.totalorder %s19, 0
      %p97 = por %p95, %p96
      %p98 = scmp.ne.s32.totalorder %s90, %s92
      %p99 = scmp.eq.s32.totalorder %s24, 1
      %p100 = por %p98, %p99
      %p101 = scmp.ne.s32.totalorder %s92, %s93
      %p102 = scmp.eq.s32.totalorder %s24, 0
      %p103 = por %p101, %p102
      %p104 = scmp.ne.s32.totalorder %s92, %s93
      %p105 = scmp.eq.s32.totalorder %s25, 1
      %p106 = por %p104, %p105
      %p108 = scmp.ne.s32.totalorder %s93, %s107
      %p109 = scmp.eq.s32.totalorder %s25, 0
      %p110 = por %p108, %p109
      %s112 = sadd.s32 %s111, 1
      %p115 = scmp.eq.s32.totalorder %s19, 1
      %p116 = scmp.ne.s32.totalorder %s111, %s113
      %p117 = scmp.eq.s32.totalorder %s19, 0
      %p118 = por %p116, %p117
      %p119 = scmp.ne.s32.totalorder %s111, %s113
      %p120 = scmp.eq.s32.totalorder %s24, 1
      %p121 = por %p119, %p120
      %p122 = scmp.ne.s32.totalorder %s113, %s114
      %p123 = scmp.eq.s32.totalorder %s24, 0
      %p124 = por %p122, %p123
      %p125 = scmp.ne.s32.totalorder %s113, %s114
      %p126 = scmp.eq.s32.totalorder %s25, 1
      %p127 = por %p125, %p126
      %p129 = scmp.ne.s32.totalorder %s114, %s128
      %p130 = scmp.eq.s32.totalorder %s25, 0
      %p131 = por %p129, %p130
      %s133 = sadd.s32 %s132, 1
      %p136 = scmp.eq.s32.totalorder %s19, 1
      %p137 = scmp.ne.s32.totalorder %s132, %s134
      %p138 = scmp.eq.s32.totalorder %s19, 0
      %p139 = por %p137, %p138
      %p140 = scmp.ne.s32.totalorder %s132, %s134
      %p141 = scmp.eq.s32.totalorder %s24, 1
      %p142 = por %p140, %p141
      %p143 = scmp.ne.s32.totalorder %s134, %s135
      %p144 = scmp.eq.s32.totalorder %s24, 0
      %p145 = por %p143, %p144
      %p146 = scmp.ne.s32.totalorder %s134, %s135
      %p147 = scmp.eq.s32.totalorder %s25, 1
      %p148 = por %p146, %p147
      %p150 = scmp.ne.s32.totalorder %s135, %s149
      %p151 = scmp.eq.s32.totalorder %s25, 0
      %p152 = por %p150, %p151
      %s154 = sadd.s32 %s153, 1
      %p157 = scmp.eq.s32.totalorder %s19, 1
      %p158 = scmp.ne.s32.totalorder %s153, %s155
      %p159 = scmp.eq.s32.totalorder %s19, 0
      %p160 = por %p158, %p159
      %p161 = scmp.ne.s32.totalorder %s153, %s155
      %p162 = scmp.eq.s32.totalorder %s24, 1
      %p163 = por %p161, %p162
      %p164 = scmp.ne.s32.totalorder %s155, %s156
      %p165 = scmp.eq.s32.totalorder %s24, 0
      %p166 = por %p164, %p165
      %p167 = scmp.ne.s32.totalorder %s155, %s156
      %p168 = scmp.eq.s32.totalorder %s25, 1
      %p169 = por %p167, %p168
      %p171 = scmp.ne.s32.totalorder %s156, %s170
      %p172 = scmp.eq.s32.totalorder %s25, 0
      %p173 = por %p171, %p172
      %s174 = ssub.s32 %s19, %s26
      %p175 = scmp.eq.s32.totalorder %s174, 0
      %s177 = sadd.s32 %s176, 1
      %s178 = scalar_select %p175, %s176, %s177
      %p181 = pneg %p175
      %p182 = scmp.eq.s32.totalorder %s19, 1
      %p183 = por %p181, %p182
      %p184 = scmp.ne.s32.totalorder %s176, %s179
      %p185 = scmp.eq.s32.totalorder %s19, 0
      %p186 = por %p184, %p185
      %p187 = scmp.ne.s32.totalorder %s176, %s179
      %p188 = scmp.eq.s32.totalorder %s24, 1
      %p189 = por %p187, %p188
      %p190 = scmp.ne.s32.totalorder %s179, %s180
      %p191 = scmp.eq.s32.totalorder %s24, 0
      %p192 = por %p190, %p191
      %p193 = scmp.ne.s32.totalorder %s179, %s180
      %p194 = scmp.eq.s32.totalorder %s25, 1
      %p195 = por %p193, %p194
      %p197 = scmp.ne.s32.totalorder %s180, %s196
      %p198 = scmp.eq.s32.totalorder %s25, 0
      %p199 = por %p197, %p198
      %s200 = ssub.s32 %s19, %s26
      %p201 = scmp.eq.s32.totalorder %s200, 0
      %s203 = sadd.s32 %s202, 1
      %s204 = scalar_select %p201, %s202, %s203
      %p207 = pneg %p201
      %p208 = scmp.eq.s32.totalorder %s19, 1
      %p209 = por %p207, %p208
      %p210 = scmp.ne.s32.totalorder %s202, %s205
      %p211 = scmp.eq.s32.totalorder %s19, 0
      %p212 = por %p210, %p211
      %p213 = scmp.ne.s32.totalorder %s202, %s205
      %p214 = scmp.eq.s32.totalorder %s24, 1
      %p215 = por %p213, %p214
      %p216 = scmp.ne.s32.totalorder %s205, %s206
      %p217 = scmp.eq.s32.totalorder %s24, 0
      %p218 = por %p216, %p217
      %p219 = scmp.ne.s32.totalorder %s205, %s206
      %p220 = scmp.eq.s32.totalorder %s25, 1
      %p221 = por %p219, %p220
      %p223 = scmp.ne.s32.totalorder %s206, %s222
      %p224 = scmp.eq.s32.totalorder %s25, 0
      %p225 = por %p223, %p224
      %s227 = sadd.s32 %s226, 1
      %p230 = scmp.eq.s32.totalorder %s19, 1
      %p231 = scmp.ne.s32.totalorder %s226, %s228
      %p232 = scmp.eq.s32.totalorder %s19, 0
      %p233 = por %p231, %p232
      %p234 = scmp.ne.s32.totalorder %s226, %s228
      %p235 = scmp.eq.s32.totalorder %s24, 1
      %p236 = por %p234, %p235
      %p237 = scmp.ne.s32.totalorder %s228, %s229
      %p238 = scmp.eq.s32.totalorder %s24, 0
      %p239 = por %p237, %p238
      %p240 = scmp.ne.s32.totalorder %s228, %s229
      %p241 = scmp.eq.s32.totalorder %s25, 1
      %p242 = por %p240, %p241
      %p244 = scmp.ne.s32.totalorder %s229, %s243
      %p245 = scmp.eq.s32.totalorder %s25, 0
      %p246 = por %p244, %p245
      %s248 = sadd.s32 %s247, 1
      %p251 = scmp.eq.s32.totalorder %s19, 1
      %p252 = scmp.ne.s32.totalorder %s247, %s249
      %p253 = scmp.eq.s32.totalorder %s19, 0
      %p254 = por %p252, %p253
      %p255 = scmp.ne.s32.totalorder %s247, %s249
      %p256 = scmp.eq.s32.totalorder %s24, 1
      %p257 = por %p255, %p256
      %p258 = scmp.ne.s32.totalorder %s249, %s250
      %p259 = scmp.eq.s32.totalorder %s24, 0
      %p260 = por %p258, %p259
      %p261 = scmp.ne.s32.totalorder %s249, %s250
      %p262 = scmp.eq.s32.totalorder %s25, 1
      %p263 = por %p261, %p262
      %p265 = scmp.ne.s32.totalorder %s250, %s264
      %p266 = scmp.eq.s32.totalorder %s25, 0
      %p267 = por %p265, %p266
      %p268 = scmp.le.s32.totalorder 1, %s19
      %p269 = scmp.lt.s32.totalorder %s19, 3
      %p270 = pnand %p268, %p269
      %p271 = pneg %p270
      // Predicated region
      $region9: #{spectral_norm_conv_forward.1} parent=5 // pred_check
        _
      $region10: #{spectral_norm_conv_forward.1} parent=5 // pred_check_branch
        %273 = sbr.rel (%p270) target = $region12
      $region11: #{spectral_norm_conv_forward.1} parent=5 // pred_region
        %s274 = ssub.s32 %s19, 1
        // Predicated region
        $region13: #{spectral_norm_conv_forward.1} parent=11 // pred_check
          %p275 = pneg %p40
        $region14: #{spectral_norm_conv_forward.1} parent=11 // pred_check_branch
          %277 = sbr.rel (%p275) target = $region16
        $region15: #{spectral_norm_conv_forward.1} parent=11 // pred_region
          _
        $region16: #{spectral_norm_conv_forward.1} parent=11 // pred_fallthru
          _
        // Predicated region
        $region17: #{spectral_norm_conv_forward.1} parent=11 // pred_check
          %p278 = pneg %p61
        $region18: #{spectral_norm_conv_forward.1} parent=11 // pred_check_branch
          %280 = sbr.rel (%p278) target = $region20
        $region19: #{spectral_norm_conv_forward.1} parent=11 // pred_region
          _
        $region20: #{spectral_norm_conv_forward.1} parent=11 // pred_fallthru
          _
        // Predicated region
        $region21: #{spectral_norm_conv_forward.1} parent=11 // pred_check
          %p281 = pneg %p82
        $region22: #{spectral_norm_conv_forward.1} parent=11 // pred_check_branch
          %283 = sbr.rel (%p281) target = $region24
        $region23: #{spectral_norm_conv_forward.1} parent=11 // pred_region
          _
        $region24: #{spectral_norm_conv_forward.1} parent=11 // pred_fallthru
          _
        // Predicated region
        $region25: #{spectral_norm_conv_forward.1} parent=11 // pred_check
          %p284 = pneg %p103
        $region26: #{spectral_norm_conv_forward.1} parent=11 // pred_check_branch
          %286 = sbr.rel (%p284) target = $region28
        $region27: #{spectral_norm_conv_forward.1} parent=11 // pred_region
          _
        $region28: #{spectral_norm_conv_forward.1} parent=11 // pred_fallthru
          _
        // Predicated region
        $region29: #{spectral_norm_conv_forward.1} parent=11 // pred_check
          %p287 = pneg %p124
        $region30: #{spectral_norm_conv_forward.1} parent=11 // pred_check_branch
          %289 = sbr.rel (%p287) target = $region32
        $region31: #{spectral_norm_conv_forward.1} parent=11 // pred_region
          _
        $region32: #{spectral_norm_conv_forward.1} parent=11 // pred_fallthru
          _
        // Predicated region
        $region33: #{spectral_norm_conv_forward.1} parent=11 // pred_check
          %p290 = pneg %p145
        $region34: #{spectral_norm_conv_forward.1} parent=11 // pred_check_branch
          %292 = sbr.rel (%p290) target = $region36
        $region35: #{spectral_norm_conv_forward.1} parent=11 // pred_region
          _
        $region36: #{spectral_norm_conv_forward.1} parent=11 // pred_fallthru
          _
        // Predicated region
        $region37: #{spectral_norm_conv_forward.1} parent=11 // pred_check
          %p293 = pneg %p166
        $region38: #{spectral_norm_conv_forward.1} parent=11 // pred_check_branch
          %295 = sbr.rel (%p293) target = $region40
        $region39: #{spectral_norm_conv_forward.1} parent=11 // pred_region
          _
        $region40: #{spectral_norm_conv_forward.1} parent=11 // pred_fallthru
          _
      $region12: #{spectral_norm_conv_forward.1} parent=5 // pred_fallthru
        _
      %p296 = scmp.lt.s32.totalorder %s19, 2
      // Predicated region
      $region41: #{spectral_norm_conv_forward.1} parent=5 // pred_check
        %p297 = pneg %p296
      $region42: #{spectral_norm_conv_forward.1} parent=5 // pred_check_branch
        %299 = sbr.rel (%p297) target = $region44
      $region43: #{spectral_norm_conv_forward.1} parent=5 // pred_region
        // Predicated region
        $region45: #{spectral_norm_conv_forward.1} parent=43 // pred_check
          %p300 = pneg %p186
        $region46: #{spectral_norm_conv_forward.1} parent=43 // pred_check_branch
          %302 = sbr.rel (%p300) target = $region48
        $region47: #{spectral_norm_conv_forward.1} parent=43 // pred_region
          %p303 = scmp.lt.s32.totalorder %s19, 1
          %s304 = scalar_select %p303, %s19, 1
          %s305 = smul.addr %s304, 2
          %s306 = smul.addr %s305, 4
          %s307 = scalar_lea.vmem %s7, %s306
        $region48: #{spectral_norm_conv_forward.1} parent=43 // pred_fallthru
          _
      $region44: #{spectral_norm_conv_forward.1} parent=5 // pred_fallthru
        _
      %p308 = scmp.le.s32.totalorder 1, %s19
      %p309 = scmp.lt.s32.totalorder %s19, 3
      %p310 = pnand %p308, %p309
      %p311 = pneg %p310
      // Predicated region
      $region49: #{spectral_norm_conv_forward.1} parent=5 // pred_check
        _
      $region50: #{spectral_norm_conv_forward.1} parent=5 // pred_check_branch
        %313 = sbr.rel (%p310) target = $region52
      $region51: #{spectral_norm_conv_forward.1} parent=5 // pred_region
        %s314 = ssub.s32 %s19, 1
        %p315 = pneg %p40
        %p316 = pneg %p37
        %p317 = pneg %p61
        %p318 = pneg %p58
        %p319 = pneg %p82
        %p320 = pneg %p79
        %p321 = pneg %p103
        %p322 = pneg %p100
        %p323 = pneg %p124
        %p324 = pneg %p121
        %p325 = pneg %p145
        %p326 = pneg %p142
        %p327 = pneg %p166
        %p328 = pneg %p163
        %p329 = scmp.lt.s32.totalorder %s24, 1
        %s330 = scalar_select %p329, %s24, 1
        %s331 = smul.addr %s330, 2
        %s332 = smul.addr %s331, 4
        %s333 = scalar_lea.vmem %s7, %s332
        %p334 = pneg %p192
        %p335 = pneg %p189
        %p336 = pneg %p218
        %p337 = pneg %p215
        %p338 = scmp.lt.s32.totalorder %s24, 1
        %s339 = scalar_select %p338, %s24, 1
        %s340 = smul.addr %s339, 2
        %s341 = smul.addr %s340, 8
        %s342 = scalar_lea.vmem %s8, %s341
        %p343 = pneg %p239
        %p344 = pneg %p236
        %p345 = pneg %p260
        %p346 = pneg %p257
        %p347 = scmp.lt.s32.totalorder %s24, 1
        %s348 = scalar_select %p347, %s24, 1
        %s349 = smul.addr %s348, 2
        %s350 = smul.addr %s349, 4
        %s351 = scalar_lea.vmem %s7, %s350
        %p352 = scmp.lt.s32.totalorder %s24, 1
        %s353 = scalar_select %p352, %s24, 1
        %s354 = smul.addr %s353, 2
        %s355 = smul.addr %s354, 8
        %s356 = scalar_lea.vmem %s8, %s355
        %v357 = vld [vmem:[%s0] sm:$0xff]
        %v358 = vld [vmem:[%s1] sm:$0xff]
        %v359 = vld [vmem:[%s1 + $0x8] sm:$0xff]
        %v360 = vld [vmem:[%s1 + $0x10] sm:$0xff]
        %v361 = vld [vmem:[%s1 + $0x18] sm:$0xff]
        %v362 = vld [vmem:[%s1 + $0x20] sm:$0xf]
        %v363 = vld [vmem:[%s5] sm:$0x1]
        %vm364 = vcmask 64512
        %v366 = vsel %vm364, %v363, 0
        %368 = vmatprep.subr.mxu0 0.0
        %369 = vmatpush1.msra.mxu0 %v357
        %370 = vmatprep.subr.mxu0 0.0
        %371 = vmatpush1.msra.mxu0 0.0
        %372 = vmatprep.subr.mxu0 0.0
        %373 = vmatpush1.msra.mxu0 0.0
        %374 = vmatprep.subr.mxu0 0.0
        %375 = vmatpush1.msra.mxu0 0.0
        %376 = vmatprep.subr.mxu0 0.0
        %377 = vmatpush1.msra.mxu0 0.0
        %378 = vmatprep.subr.mxu0 0.0
        %379 = vmatpush1.msra.mxu0 0.0
        %380 = vmatprep.subr.mxu0 0.0
        %381 = vmatpush1.msra.mxu0 0.0
        %382 = vmatprep.subr.mxu0 0.0
        %383 = vmatpush1.msra.mxu0 0.0
        %384 = vmatprep.subr.mxu0 0.0
        %385 = vmatpush1.msra.mxu0 0.0
        %386 = vmatprep.subr.mxu0 0.0
        %387 = vmatpush1.msra.mxu0 0.0
        %388 = vmatprep.subr.mxu0 0.0
        %389 = vmatpush1.msra.mxu0 0.0
        %390 = vmatprep.subr.mxu0 0.0
        %391 = vmatpush1.msra.mxu0 0.0
        %392 = vmatprep.subr.mxu0 0.0
        %393 = vmatpush1.msra.mxu0 0.0
        %394 = vmatprep.subr.mxu0 0.0
        %395 = vmatpush1.msra.mxu0 0.0
        %396 = vmatprep.subr.mxu0 0.0
        %397 = vmatpush1.msra.mxu0 0.0
        %398 = vmatprep.subr.mxu0 0.0
        %399 = vmatpush1.msra.mxu0 0.0
        %400 = vmatprep.subr.mxu0 0.0
        %401 = vmatpush1.msra.mxu0 0.0
        %402 = vmatprep.subr.mxu0 0.0
        %403 = vmatpush1.msra.mxu0 0.0
        %404 = vmatprep.subr.mxu0 0.0
        %405 = vmatpush1.msra.mxu0 0.0
        %406 = vmatprep.subr.mxu0 0.0
        %407 = vmatpush1.msra.mxu0 0.0
        %408 = vmatprep.subr.mxu0 0.0
        %409 = vmatpush1.msra.mxu0 0.0
        %410 = vmatprep.subr.mxu0 0.0
        %411 = vmatpush1.msra.mxu0 0.0
        %412 = vmatprep.subr.mxu0 0.0
        %413 = vmatpush1.msra.mxu0 0.0
        %414 = vmatprep.subr.mxu0 0.0
        %415 = vmatpush1.msra.mxu0 0.0
        %416 = vmatprep.subr.mxu0 0.0
        %417 = vmatpush1.msra.mxu0 0.0
        %418 = vmatprep.subr.mxu0 0.0
        %419 = vmatpush1.msra.mxu0 0.0
        %420 = vmatprep.subr.mxu0 0.0
        %421 = vmatpush1.msra.mxu0 0.0
        %422 = vmatprep.subr.mxu0 0.0
        %423 = vmatpush1.msra.mxu0 0.0
        %424 = vmatprep.subr.mxu0 0.0
        %425 = vmatpush1.msra.mxu0 0.0
        %426 = vmatprep.subr.mxu0 0.0
        %427 = vmatpush1.msra.mxu0 0.0
        %428 = vmatprep.subr.mxu0 0.0
        %429 = vmatpush1.msra.mxu0 0.0
        %430 = vmatprep.subr.mxu0 0.0
        %431 = vmatpush1.msra.mxu0 0.0
        %432 = vmatprep.mubr.f32.mxu0 0.0
        %433 = vmatmul.mubr.f32.gmra.mrb[0].mxu0 %v366
        %v434 = vpop.f32.mrb[0].mxu0
        %v435 = vadd.f32 0.0, %v434
        %v436 = vpop.f32.mrb[0].mxu0
        %437 = vdwg.mxu0
        %v438 = vmul.f32 %v435, %v435
        %vm439 = vcmask 286720
        %v440 = vsel %vm439, %v438, 0.0
        %441 = vadd.xlane.f32.xlu0 %v440
        %v442 = vpop.xlane.xlu0 %441
        %v443 = vrot.slane %v442, 4
        %v444 = vadd.f32 %v442, %v443
        %v445 = vrot.slane %v444, 2
        %v446 = vadd.f32 %v444, %v445
        %v447 = vrot.slane %v446, 1
        %v448 = vadd.f32 %v446, %v447
        %s449 = vtos %v448
        %v450 = vstv %s449
        %v451 = vrsqrt.pop %v450
        %v452 = vmul.f32 %v450, %v451
        %vm453 = vcmp.eq.f32.partialorder %v450, inf
        %v454 = vsel %vm453, %v450, %v452
        %vm455 = vcmp.eq.f32.partialorder %v450, 0.0
        %v456 = vand.u32 %v450, 2147483648
        %v457 = vsel %vm455, %v456, %v454
        %s458 = vtos %v457
        %s459 = sadd.f32 %s458, 1e-12
        %v460 = vstv %s459
        %v461 = vrcp.pop %v460
        %v462 = vmul.f32 %v435, %v461
        %vm463 = vcmask 293888
        %v465 = vsel %vm463, %v462, 0
        %vm467 = vcmask 1043456
        %v469 = vsel %vm467, %v362, 0
        %471 = vmatprep.subr.mxu0 0.0
        %472 = vmatpush1.msra.mxu0 %v358
        %473 = vmatprep.subr.mxu0 0.0
        %474 = vmatpush1.msra.mxu0 %v359
        %475 = vmatprep.subr.mxu0 0.0
        %476 = vmatpush1.msra.mxu0 %v360
        %477 = vmatprep.subr.mxu0 0.0
        %478 = vmatpush1.msra.mxu0 %v361
        %479 = vmatprep.subr.mxu0 0.0
        %480 = vmatpush1.msra.mxu0 %v469
        %481 = vmatprep.subr.mxu0 0.0
        %482 = vmatpush1.msra.mxu0 0.0
        %483 = vmatprep.subr.mxu0 0.0
        %484 = vmatpush1.msra.mxu0 0.0
        %485 = vmatprep.subr.mxu0 0.0
        %486 = vmatpush1.msra.mxu0 0.0
        %487 = vmatprep.subr.mxu0 0.0
        %488 = vmatpush1.msra.mxu0 0.0
        %489 = vmatprep.subr.mxu0 0.0
        %490 = vmatpush1.msra.mxu0 0.0
        %491 = vmatprep.subr.mxu0 0.0
        %492 = vmatpush1.msra.mxu0 0.0
        %493 = vmatprep.subr.mxu0 0.0
        %494 = vmatpush1.msra.mxu0 0.0
        %495 = vmatprep.subr.mxu0 0.0
        %496 = vmatpush1.msra.mxu0 0.0
        %497 = vmatprep.subr.mxu0 0.0
        %498 = vmatpush1.msra.mxu0 0.0
        %499 = vmatprep.subr.mxu0 0.0
        %500 = vmatpush1.msra.mxu0 0.0
        %501 = vmatprep.subr.mxu0 0.0
        %502 = vmatpush1.msra.mxu0 0.0
        %503 = vmatprep.subr.mxu0 0.0
        %504 = vmatpush1.msra.mxu0 0.0
        %505 = vmatprep.subr.mxu0 0.0
        %506 = vmatpush1.msra.mxu0 0.0
        %507 = vmatprep.subr.mxu0 0.0
        %508 = vmatpush1.msra.mxu0 0.0
        %509 = vmatprep.subr.mxu0 0.0
        %510 = vmatpush1.msra.mxu0 0.0
        %511 = vmatprep.subr.mxu0 0.0
        %512 = vmatpush1.msra.mxu0 0.0
        %513 = vmatprep.subr.mxu0 0.0
        %514 = vmatpush1.msra.mxu0 0.0
        %515 = vmatprep.subr.mxu0 0.0
        %516 = vmatpush1.msra.mxu0 0.0
        %517 = vmatprep.subr.mxu0 0.0
        %518 = vmatpush1.msra.mxu0 0.0
        %519 = vmatprep.subr.mxu0 0.0
        %520 = vmatpush1.msra.mxu0 0.0
        %521 = vmatprep.subr.mxu0 0.0
        %522 = vmatpush1.msra.mxu0 0.0
        %523 = vmatprep.subr.mxu0 0.0
        %524 = vmatpush1.msra.mxu0 0.0
        %525 = vmatprep.subr.mxu0 0.0
        %526 = vmatpush1.msra.mxu0 0.0
        %527 = vmatprep.subr.mxu0 0.0
        %528 = vmatpush1.msra.mxu0 0.0
        %529 = vmatprep.subr.mxu0 0.0
        %530 = vmatpush1.msra.mxu0 0.0
        %531 = vmatprep.subr.mxu0 0.0
        %532 = vmatpush1.msra.mxu0 0.0
        %533 = vmatprep.subr.mxu0 0.0
        %534 = vmatpush1.msra.mxu0 0.0
        %535 = vmatprep.mubr.f32.mxu0 0.0
        %536 = vmatmul.mubr.f32.gmra.mrb[0].mxu0 %v465
        %v537 = vpop.f32.mrb[0].mxu0
        %v538 = vadd.f32 0.0, %v537
        %v539 = vpop.f32.mrb[0].mxu0
        %540 = vdwg.mxu0
        %v541 = vmul.f32 %v538, %v538
        %vm542 = vcmask 57344
        %v543 = vsel %vm542, %v541, 0.0
        %544 = vadd.xlane.f32.xlu0 %v543
        %v545 = vpop.xlane.xlu0 %544
        %v546 = vrot.slane %v545, 4
        %v547 = vadd.f32 %v545, %v546
        %v548 = vrot.slane %v547, 2
        %v549 = vadd.f32 %v547, %v548
        %v550 = vrot.slane %v549, 1
        %v551 = vadd.f32 %v549, %v550
        %s552 = vtos %v551
        %v553 = vstv %s552
        %v554 = vrsqrt.pop %v553
        %v555 = vmul.f32 %v553, %v554
        %vm556 = vcmp.eq.f32.partialorder %v553, inf
        %v557 = vsel %vm556, %v553, %v555
        %vm558 = vcmp.eq.f32.partialorder %v553, 0.0
        %v559 = vand.u32 %v553, 2147483648
        %v560 = vsel %vm558, %v559, %v557
        %s561 = vtos %v560
        %s562 = sadd.f32 %s561, 1e-12
        %v563 = vstv %s562
        %v564 = vrcp.pop %v563
        %v565 = vmul.f32 %v538, %v564
        %v566 = vmul.f32 %v565, %v538
        %v567 = vsel %vm542, %v566, 0.0
        %568 = vadd.xlane.f32.xlu0 %v567
        %v569 = vpop.xlane.xlu0 %568
        %v570 = vrot.slane %v569, 4
        %v571 = vadd.f32 %v569, %v570
        %v572 = vrot.slane %v571, 2
        %v573 = vadd.f32 %v571, %v572
        %v574 = vrot.slane %v573, 1
        %v575 = vadd.f32 %v573, %v574
        %s576 = vtos %v575
        %v577 = vstv %s576
        %v578 = vrcp.pop %v577
        %s579 = vtos %v578
        %580 = vst.msk [vmem:[#allocation2] sm:$0x1] %vm542, %v565
        %581 = vst.msk [vmem:[#allocation4] sm:$0x1] %vm439, %v462
        %v582 = vld [vmem:[%s351] sm:$0xff]
        %v583 = vld [vmem:[%s2] sm:$0xff]
        %v584 = vld [vmem:[%s2 + $0x8] sm:$0xff]
        %v585 = vld [vmem:[%s2 + $0x10] sm:$0xff]
        %v586 = vld [vmem:[%s2 + $0x18] sm:$0xff]
        %v587 = vld [vmem:[%s2 + $0x20] sm:$0xff]
        %v588 = vld [vmem:[%s2 + $0x28] sm:$0xff]
        %v589 = vld [vmem:[%s2 + $0x30] sm:$0xff]
        %v590 = vld [vmem:[%s2 + $0x38] sm:$0xff]
        %v591 = vld [vmem:[%s2 + $0x40] sm:$0xff]
        %v592 = vstv %s579
        %v593 = vmul.f32 %v583, %v592
        %v594 = vmul.f32 %v584, %v592
        %v595 = vmul.f32 %v585, %v592
        %v596 = vmul.f32 %v586, %v592
        %v597 = vmul.f32 %v587, %v592
        %v598 = vmul.f32 %v588, %v592
        %v599 = vmul.f32 %v589, %v592
        %v600 = vmul.f32 %v590, %v592
        %v601 = vmul.f32 %v591, %v592
        %v603 = vcombine.high %v582, %v582
        %605 = vrot.lane.b32.xlu0 %v582, 17
        %v606 = vpop.permute.xlu0 %605
        %607 = vrot.lane.b32.xlu0 %v603, 17
        %v608 = vpop.permute.xlu0 %607
        %v609 = vlaneseq
        %v610 = vand.u32 %v609, 127
        %vm611 = vcmp.lt.s32.totalorder %v610, 17
        %v612 = vsel %vm611, %v606, %v608
        %v613 = vsel %vm611, %v608, %v606
        %v614 = vld [vmem:[%s4] sm:$0x3]
        %v616 = vlaneseq
        %v617 = vshrl.u32 %v616, 7
        %v618 = vsub.s32 0, %v617
        %v619 = vrot.slane %v614, %v618
        %v620 = vlaneseq
        %v621 = vshrl.u32 %v620, 7
        %v622 = vsub.s32 1, %v621
        %v623 = vrot.slane %v614, %v622
        %v626 = vmul.f32 %v613, %v619
        %v627 = vmul.f32 %v612, %v623
        %628 = vrot.lane.b32.xlu0 %v582, 16
        %v629 = vpop.permute.xlu0 %628
        %630 = vrot.lane.b32.xlu0 %v603, 16
        %v631 = vpop.permute.xlu0 %630
        %vm632 = vcmp.lt.s32.totalorder %v610, 16
        %v633 = vsel %vm632, %v629, %v631
        %v634 = vsel %vm632, %v631, %v629
        %s635 = scalar_lea.vmem %s4, 2
        %v636 = vld [vmem:[%s635] sm:$0x3]
        %v638 = vlaneseq
        %v639 = vshrl.u32 %v638, 7
        %v640 = vsub.s32 0, %v639
        %v641 = vrot.slane %v636, %v640
        %v642 = vlaneseq
        %v643 = vshrl.u32 %v642, 7
        %v644 = vsub.s32 1, %v643
        %v645 = vrot.slane %v636, %v644
        %v648 = vmul.f32 %v634, %v641
        %v649 = vmul.f32 %v633, %v645
        %vm650 = vcmask 31744
        %v652 = vsel %vm650, %v594, 0
        %v655 = vsel %vm467, %v648, 0
        %v658 = vsel %vm467, %v649, 0
        %660 = vmatprep.subr.mxu0 %v658
        %661 = vmatpush1.msra.mxu0 %v655
        %662 = vmatprep.subr.mxu0 0.0
        %663 = vmatpush1.msra.mxu0 0.0
        %664 = vmatprep.subr.mxu0 0.0
        %665 = vmatpush1.msra.mxu0 0.0
        %666 = vmatprep.subr.mxu0 0.0
        %667 = vmatpush1.msra.mxu0 0.0
        %668 = vmatprep.subr.mxu0 0.0
        %669 = vmatpush1.msra.mxu0 0.0
        %670 = vmatprep.subr.mxu0 0.0
        %671 = vmatpush1.msra.mxu0 0.0
        %672 = vmatprep.subr.mxu0 0.0
        %673 = vmatpush1.msra.mxu0 0.0
        %674 = vmatprep.subr.mxu0 0.0
        %675 = vmatpush1.msra.mxu0 0.0
        %676 = vmatprep.subr.mxu0 0.0
        %677 = vmatpush1.msra.mxu0 0.0
        %678 = vmatprep.subr.mxu0 0.0
        %679 = vmatpush1.msra.mxu0 0.0
        %680 = vmatprep.subr.mxu0 0.0
        %681 = vmatpush1.msra.mxu0 0.0
        %682 = vmatprep.subr.mxu0 0.0
        %683 = vmatpush1.msra.mxu0 0.0
        %684 = vmatprep.subr.mxu0 0.0
        %685 = vmatpush1.msra.mxu0 0.0
        %686 = vmatprep.subr.mxu0 0.0
        %687 = vmatpush1.msra.mxu0 0.0
        %688 = vmatprep.subr.mxu0 0.0
        %689 = vmatpush1.msra.mxu0 0.0
        %690 = vmatprep.subr.mxu0 0.0
        %691 = vmatpush1.msra.mxu0 0.0
        %692 = vmatprep.subr.mxu0 0.0
        %693 = vmatpush1.msra.mxu0 0.0
        %694 = vmatprep.subr.mxu0 0.0
        %695 = vmatpush1.msra.mxu0 0.0
        %696 = vmatprep.subr.mxu0 0.0
        %697 = vmatpush1.msra.mxu0 0.0
        %698 = vmatprep.subr.mxu0 0.0
        %699 = vmatpush1.msra.mxu0 0.0
        %700 = vmatprep.subr.mxu0 0.0
        %701 = vmatpush1.msra.mxu0 0.0
        %702 = vmatprep.subr.mxu0 0.0
        %703 = vmatpush1.msra.mxu0 0.0
        %704 = vmatprep.subr.mxu0 0.0
        %705 = vmatpush1.msra.mxu0 0.0
        %706 = vmatprep.subr.mxu0 0.0
        %707 = vmatpush1.msra.mxu0 0.0
        %708 = vmatprep.subr.mxu0 0.0
        %709 = vmatpush1.msra.mxu0 0.0
        %710 = vmatprep.subr.mxu0 0.0
        %711 = vmatpush1.msra.mxu0 0.0
        %712 = vmatprep.subr.mxu0 0.0
        %713 = vmatpush1.msra.mxu0 0.0
        %714 = vmatprep.subr.mxu0 0.0
        %715 = vmatpush1.msra.mxu0 0.0
        %716 = vmatprep.subr.mxu0 0.0
        %717 = vmatpush1.msra.mxu0 0.0
        %718 = vmatprep.subr.mxu0 0.0
        %719 = vmatpush1.msra.mxu0 0.0
        %720 = vmatprep.subr.mxu0 0.0
        %721 = vmatpush1.msra.mxu0 0.0
        %722 = vmatprep.subr.mxu0 0.0
        %723 = vmatpush1.msra.mxu0 0.0
        %724 = vmatprep.mubr.f32.mxu0 0.0
        %725 = vmatmul.mubr.f32.gmra.mrb[0].mxu0 %v652
        %v726 = vpop.f32.mrb[0].mxu0
        %v727 = vadd.f32 0.0, %v726
        %v728 = vpop.f32.mrb[0].mxu0
        %v729 = vadd.f32 0.0, %v728
        %730 = vdwg.mxu0
        %v732 = vsel %vm650, %v593, 0
        %v735 = vsel %vm467, %v626, 0
        %v738 = vsel %vm467, %v627, 0
        %740 = vmatprep.subr.mxu0 %v738
        %741 = vmatpush1.msra.mxu0 %v735
        %742 = vmatprep.subr.mxu0 0.0
        %743 = vmatpush1.msra.mxu0 0.0
        %744 = vmatprep.subr.mxu0 0.0
        %745 = vmatpush1.msra.mxu0 0.0
        %746 = vmatprep.subr.mxu0 0.0
        %747 = vmatpush1.msra.mxu0 0.0
        %748 = vmatprep.subr.mxu0 0.0
        %749 = vmatpush1.msra.mxu0 0.0
        %750 = vmatprep.subr.mxu0 0.0
        %751 = vmatpush1.msra.mxu0 0.0
        %752 = vmatprep.subr.mxu0 0.0
        %753 = vmatpush1.msra.mxu0 0.0
        %754 = vmatprep.subr.mxu0 0.0
        %755 = vmatpush1.msra.mxu0 0.0
        %756 = vmatprep.subr.mxu0 0.0
        %757 = vmatpush1.msra.mxu0 0.0
        %758 = vmatprep.subr.mxu0 0.0
        %759 = vmatpush1.msra.mxu0 0.0
        %760 = vmatprep.subr.mxu0 0.0
        %761 = vmatpush1.msra.mxu0 0.0
        %762 = vmatprep.subr.mxu0 0.0
        %763 = vmatpush1.msra.mxu0 0.0
        %764 = vmatprep.subr.mxu0 0.0
        %765 = vmatpush1.msra.mxu0 0.0
        %766 = vmatprep.subr.mxu0 0.0
        %767 = vmatpush1.msra.mxu0 0.0
        %768 = vmatprep.subr.mxu0 0.0
        %769 = vmatpush1.msra.mxu0 0.0
        %770 = vmatprep.subr.mxu0 0.0
        %771 = vmatpush1.msra.mxu0 0.0
        %772 = vmatprep.subr.mxu0 0.0
        %773 = vmatpush1.msra.mxu0 0.0
        %774 = vmatprep.subr.mxu0 0.0
        %775 = vmatpush1.msra.mxu0 0.0
        %776 = vmatprep.subr.mxu0 0.0
        %777 = vmatpush1.msra.mxu0 0.0
        %778 = vmatprep.subr.mxu0 0.0
        %779 = vmatpush1.msra.mxu0 0.0
        %780 = vmatprep.subr.mxu0 0.0
        %781 = vmatpush1.msra.mxu0 0.0
        %782 = vmatprep.subr.mxu0 0.0
        %783 = vmatpush1.msra.mxu0 0.0
        %784 = vmatprep.subr.mxu0 0.0
        %785 = vmatpush1.msra.mxu0 0.0
        %786 = vmatprep.subr.mxu0 0.0
        %787 = vmatpush1.msra.mxu0 0.0
        %788 = vmatprep.subr.mxu0 0.0
        %789 = vmatpush1.msra.mxu0 0.0
        %790 = vmatprep.subr.mxu0 0.0
        %791 = vmatpush1.msra.mxu0 0.0
        %792 = vmatprep.subr.mxu0 0.0
        %793 = vmatpush1.msra.mxu0 0.0
        %794 = vmatprep.subr.mxu0 0.0
        %795 = vmatpush1.msra.mxu0 0.0
        %796 = vmatprep.subr.mxu0 0.0
        %797 = vmatpush1.msra.mxu0 0.0
        %798 = vmatprep.subr.mxu0 0.0
        %799 = vmatpush1.msra.mxu0 0.0
        %800 = vmatprep.subr.mxu0 0.0
        %801 = vmatpush1.msra.mxu0 0.0
        %802 = vmatprep.subr.mxu0 0.0
        %803 = vmatpush1.msra.mxu0 0.0
        %804 = vmatprep.mubr.f32.mxu0 0.0
        %805 = vmatmul.mubr.f32.gmra.mrb[0].mxu0 %v732
        %v806 = vpop.f32.mrb[0].mxu0
        %v807 = vadd.f32 %v727, %v806
        %v808 = vpop.f32.mrb[0].mxu0
        %v809 = vadd.f32 %v729, %v808
        %810 = vdwg.mxu0
        %811 = vrot.lane.b32.xlu0 %v582, 15
        %v812 = vpop.permute.xlu0 %811
        %813 = vrot.lane.b32.xlu0 %v603, 15
        %v814 = vpop.permute.xlu0 %813
        %vm815 = vcmp.lt.s32.totalorder %v610, 15
        %v816 = vsel %vm815, %v812, %v814
        %v817 = vsel %vm815, %v814, %v812
        %s818 = scalar_lea.vmem %s4, 4
        %v819 = vld [vmem:[%s818] sm:$0x3]
        %v821 = vlaneseq
        %v822 = vshrl.u32 %v821, 7
        %v823 = vsub.s32 0, %v822
        %v824 = vrot.slane %v819, %v823
        %v825 = vlaneseq
        %v826 = vshrl.u32 %v825, 7
        %v827 = vsub.s32 1, %v826
        %v828 = vrot.slane %v819, %v827
        %v831 = vmul.f32 %v817, %v824
        %v832 = vmul.f32 %v816, %v828
        %v834 = vsel %vm650, %v595, 0
        %v837 = vsel %vm467, %v831, 0
        %v840 = vsel %vm467, %v832, 0
        %842 = vmatprep.subr.mxu0 %v840
        %843 = vmatpush1.msra.mxu0 %v837
        %844 = vmatprep.subr.mxu0 0.0
        %845 = vmatpush1.msra.mxu0 0.0
        %846 = vmatprep.subr.mxu0 0.0
        %847 = vmatpush1.msra.mxu0 0.0
        %848 = vmatprep.subr.mxu0 0.0
        %849 = vmatpush1.msra.mxu0 0.0
        %850 = vmatprep.subr.mxu0 0.0
        %851 = vmatpush1.msra.mxu0 0.0
        %852 = vmatprep.subr.mxu0 0.0
        %853 = vmatpush1.msra.mxu0 0.0
        %854 = vmatprep.subr.mxu0 0.0
        %855 = vmatpush1.msra.mxu0 0.0
        %856 = vmatprep.subr.mxu0 0.0
        %857 = vmatpush1.msra.mxu0 0.0
        %858 = vmatprep.subr.mxu0 0.0
        %859 = vmatpush1.msra.mxu0 0.0
        %860 = vmatprep.subr.mxu0 0.0
        %861 = vmatpush1.msra.mxu0 0.0
        %862 = vmatprep.subr.mxu0 0.0
        %863 = vmatpush1.msra.mxu0 0.0
        %864 = vmatprep.subr.mxu0 0.0
        %865 = vmatpush1.msra.mxu0 0.0
        %866 = vmatprep.subr.mxu0 0.0
        %867 = vmatpush1.msra.mxu0 0.0
        %868 = vmatprep.subr.mxu0 0.0
        %869 = vmatpush1.msra.mxu0 0.0
        %870 = vmatprep.subr.mxu0 0.0
        %871 = vmatpush1.msra.mxu0 0.0
        %872 = vmatprep.subr.mxu0 0.0
        %873 = vmatpush1.msra.mxu0 0.0
        %874 = vmatprep.subr.mxu0 0.0
        %875 = vmatpush1.msra.mxu0 0.0
        %876 = vmatprep.subr.mxu0 0.0
        %877 = vmatpush1.msra.mxu0 0.0
        %878 = vmatprep.subr.mxu0 0.0
        %879 = vmatpush1.msra.mxu0 0.0
        %880 = vmatprep.subr.mxu0 0.0
        %881 = vmatpush1.msra.mxu0 0.0
        %882 = vmatprep.subr.mxu0 0.0
        %883 = vmatpush1.msra.mxu0 0.0
        %884 = vmatprep.subr.mxu0 0.0
        %885 = vmatpush1.msra.mxu0 0.0
        %886 = vmatprep.subr.mxu0 0.0
        %887 = vmatpush1.msra.mxu0 0.0
        %888 = vmatprep.subr.mxu0 0.0
        %889 = vmatpush1.msra.mxu0 0.0
        %890 = vmatprep.subr.mxu0 0.0
        %891 = vmatpush1.msra.mxu0 0.0
        %892 = vmatprep.subr.mxu0 0.0
        %893 = vmatpush1.msra.mxu0 0.0
        %894 = vmatprep.subr.mxu0 0.0
        %895 = vmatpush1.msra.mxu0 0.0
        %896 = vmatprep.subr.mxu0 0.0
        %897 = vmatpush1.msra.mxu0 0.0
        %898 = vmatprep.subr.mxu0 0.0
        %899 = vmatpush1.msra.mxu0 0.0
        %900 = vmatprep.subr.mxu0 0.0
        %901 = vmatpush1.msra.mxu0 0.0
        %902 = vmatprep.subr.mxu0 0.0
        %903 = vmatpush1.msra.mxu0 0.0
        %904 = vmatprep.subr.mxu0 0.0
        %905 = vmatpush1.msra.mxu0 0.0
        %906 = vmatprep.mubr.f32.mxu0 0.0
        %907 = vmatmul.mubr.f32.gmra.mrb[0].mxu0 %v834
        %v908 = vpop.f32.mrb[0].mxu0
        %v909 = vadd.f32 0.0, %v908
        %v910 = vpop.f32.mrb[0].mxu0
        %v911 = vadd.f32 0.0, %v910
        %912 = vdwg.mxu0
        %v913 = vadd.f32 %v807, %v909
        %v914 = vadd.f32 %v809, %v911
        %915 = vrot.lane.b32.xlu0 %v582, 1
        %v916 = vpop.permute.xlu0 %915
        %917 = vrot.lane.b32.xlu0 %v603, 1
        %v918 = vpop.permute.xlu0 %917
        %vm919 = vcmp.lt.s32.totalorder %v610, 1
        %v920 = vsel %vm919, %v916, %v918
        %v921 = vsel %vm919, %v918, %v916
        %s922 = scalar_lea.vmem %s4, 6
        %v923 = vld [vmem:[%s922] sm:$0x3]
        %v925 = vlaneseq
        %v926 = vshrl.u32 %v925, 7
        %v927 = vsub.s32 0, %v926
        %v928 = vrot.slane %v923, %v927
        %v929 = vlaneseq
        %v930 = vshrl.u32 %v929, 7
        %v931 = vsub.s32 1, %v930
        %v932 = vrot.slane %v923, %v931
        %v935 = vmul.f32 %v921, %v928
        %v936 = vmul.f32 %v920, %v932
        %v938 = vsel %vm650, %v596, 0
        %v941 = vsel %vm467, %v935, 0
        %v944 = vsel %vm467, %v936, 0
        %946 = vmatprep.subr.mxu0 %v944
        %947 = vmatpush1.msra.mxu0 %v941
        %948 = vmatprep.subr.mxu0 0.0
        %949 = vmatpush1.msra.mxu0 0.0
        %950 = vmatprep.subr.mxu0 0.0
        %951 = vmatpush1.msra.mxu0 0.0
        %952 = vmatprep.subr.mxu0 0.0
        %953 = vmatpush1.msra.mxu0 0.0
        %954 = vmatprep.subr.mxu0 0.0
        %955 = vmatpush1.msra.mxu0 0.0
        %956 = vmatprep.subr.mxu0 0.0
        %957 = vmatpush1.msra.mxu0 0.0
        %958 = vmatprep.subr.mxu0 0.0
        %959 = vmatpush1.msra.mxu0 0.0
        %960 = vmatprep.subr.mxu0 0.0
        %961 = vmatpush1.msra.mxu0 0.0
        %962 = vmatprep.subr.mxu0 0.0
        %963 = vmatpush1.msra.mxu0 0.0
        %964 = vmatprep.subr.mxu0 0.0
        %965 = vmatpush1.msra.mxu0 0.0
        %966 = vmatprep.subr.mxu0 0.0
        %967 = vmatpush1.msra.mxu0 0.0
        %968 = vmatprep.subr.mxu0 0.0
        %969 = vmatpush1.msra.mxu0 0.0
        %970 = vmatprep.subr.mxu0 0.0
        %971 = vmatpush1.msra.mxu0 0.0
        %972 = vmatprep.subr.mxu0 0.0
        %973 = vmatpush1.msra.mxu0 0.0
        %974 = vmatprep.subr.mxu0 0.0
        %975 = vmatpush1.msra.mxu0 0.0
        %976 = vmatprep.subr.mxu0 0.0
        %977 = vmatpush1.msra.mxu0 0.0
        %978 = vmatprep.subr.mxu0 0.0
        %979 = vmatpush1.msra.mxu0 0.0
        %980 = vmatprep.subr.mxu0 0.0
        %981 = vmatpush1.msra.mxu0 0.0
        %982 = vmatprep.subr.mxu0 0.0
        %983 = vmatpush1.msra.mxu0 0.0
        %984 = vmatprep.subr.mxu0 0.0
        %985 = vmatpush1.msra.mxu0 0.0
        %986 = vmatprep.subr.mxu0 0.0
        %987 = vmatpush1.msra.mxu0 0.0
        %988 = vmatprep.subr.mxu0 0.0
        %989 = vmatpush1.msra.mxu0 0.0
        %990 = vmatprep.subr.mxu0 0.0
        %991 = vmatpush1.msra.mxu0 0.0
        %992 = vmatprep.subr.mxu0 0.0
        %993 = vmatpush1.msra.mxu0 0.0
        %994 = vmatprep.subr.mxu0 0.0
        %995 = vmatpush1.msra.mxu0 0.0
        %996 = vmatprep.subr.mxu0 0.0
        %997 = vmatpush1.msra.mxu0 0.0
        %998 = vmatprep.subr.mxu0 0.0
        %999 = vmatpush1.msra.mxu0 0.0
        %1000 = vmatprep.subr.mxu0 0.0
        %1001 = vmatpush1.msra.mxu0 0.0
        %1002 = vmatprep.subr.mxu0 0.0
        %1003 = vmatpush1.msra.mxu0 0.0
        %1004 = vmatprep.subr.mxu0 0.0
        %1005 = vmatpush1.msra.mxu0 0.0
        %1006 = vmatprep.subr.mxu0 0.0
        %1007 = vmatpush1.msra.mxu0 0.0
        %1008 = vmatprep.subr.mxu0 0.0
        %1009 = vmatpush1.msra.mxu0 0.0
        %1010 = vmatprep.mubr.f32.mxu0 0.0
        %1011 = vmatmul.mubr.f32.gmra.mrb[0].mxu0 %v938
        %v1012 = vpop.f32.mrb[0].mxu0
        %v1013 = vadd.f32 0.0, %v1012
        %v1014 = vpop.f32.mrb[0].mxu0
        %v1015 = vadd.f32 0.0, %v1014
        %1016 = vdwg.mxu0
        %v1017 = vadd.f32 %v913, %v1013
        %v1018 = vadd.f32 %v914, %v1015
        %s1019 = scalar_lea.vmem %s4, 8
        %v1020 = vld [vmem:[%s1019] sm:$0x3]
        %v1022 = vlaneseq
        %v1023 = vshrl.u32 %v1022, 7
        %v1024 = vsub.s32 0, %v1023
        %v1025 = vrot.slane %v1020, %v1024
        %v1026 = vlaneseq
        %v1027 = vshrl.u32 %v1026, 7
        %v1028 = vsub.s32 1, %v1027
        %v1029 = vrot.slane %v1020, %v1028
        %v1030 = vcombine.low %v1025, %v1029
        %v1032 = vmul.f32 %v582, %v1030
        %v1034 = vcombine.high %v1032, %v1032
        %v1036 = vsel %vm650, %v597, 0
        %v1038 = vsel %vm467, %v1032, 0
        %v1040 = vsel %vm467, %v1034, 0
        %1042 = vmatprep.subr.mxu0 %v1040
        %1043 = vmatpush1.msra.mxu0 %v1038
        %1044 = vmatprep.subr.mxu0 0.0
        %1045 = vmatpush1.msra.mxu0 0.0
        %1046 = vmatprep.subr.mxu0 0.0
        %1047 = vmatpush1.msra.mxu0 0.0
        %1048 = vmatprep.subr.mxu0 0.0
        %1049 = vmatpush1.msra.mxu0 0.0
        %1050 = vmatprep.subr.mxu0 0.0
        %1051 = vmatpush1.msra.mxu0 0.0
        %1052 = vmatprep.subr.mxu0 0.0
        %1053 = vmatpush1.msra.mxu0 0.0
        %1054 = vmatprep.subr.mxu0 0.0
        %1055 = vmatpush1.msra.mxu0 0.0
        %1056 = vmatprep.subr.mxu0 0.0
        %1057 = vmatpush1.msra.mxu0 0.0
        %1058 = vmatprep.subr.mxu0 0.0
        %1059 = vmatpush1.msra.mxu0 0.0
        %1060 = vmatprep.subr.mxu0 0.0
        %1061 = vmatpush1.msra.mxu0 0.0
        %1062 = vmatprep.subr.mxu0 0.0
        %1063 = vmatpush1.msra.mxu0 0.0
        %1064 = vmatprep.subr.mxu0 0.0
        %1065 = vmatpush1.msra.mxu0 0.0
        %1066 = vmatprep.subr.mxu0 0.0
        %1067 = vmatpush1.msra.mxu0 0.0
        %1068 = vmatprep.subr.mxu0 0.0
        %1069 = vmatpush1.msra.mxu0 0.0
        %1070 = vmatprep.subr.mxu0 0.0
        %1071 = vmatpush1.msra.mxu0 0.0
        %1072 = vmatprep.subr.mxu0 0.0
        %1073 = vmatpush1.msra.mxu0 0.0
        %1074 = vmatprep.subr.mxu0 0.0
        %1075 = vmatpush1.msra.mxu0 0.0
        %1076 = vmatprep.subr.mxu0 0.0
        %1077 = vmatpush1.msra.mxu0 0.0
        %1078 = vmatprep.subr.mxu0 0.0
        %1079 = vmatpush1.msra.mxu0 0.0
        %1080 = vmatprep.subr.mxu0 0.0
        %1081 = vmatpush1.msra.mxu0 0.0
        %1082 = vmatprep.subr.mxu0 0.0
        %1083 = vmatpush1.msra.mxu0 0.0
        %1084 = vmatprep.subr.mxu0 0.0
        %1085 = vmatpush1.msra.mxu0 0.0
        %1086 = vmatprep.subr.mxu0 0.0
        %1087 = vmatpush1.msra.mxu0 0.0
        %1088 = vmatprep.subr.mxu0 0.0
        %1089 = vmatpush1.msra.mxu0 0.0
        %1090 = vmatprep.subr.mxu0 0.0
        %1091 = vmatpush1.msra.mxu0 0.0
        %1092 = vmatprep.subr.mxu0 0.0
        %1093 = vmatpush1.msra.mxu0 0.0
        %1094 = vmatprep.subr.mxu0 0.0
        %1095 = vmatpush1.msra.mxu0 0.0
        %1096 = vmatprep.subr.mxu0 0.0
        %1097 = vmatpush1.msra.mxu0 0.0
        %1098 = vmatprep.subr.mxu0 0.0
        %1099 = vmatpush1.msra.mxu0 0.0
        %1100 = vmatprep.subr.mxu0 0.0
        %1101 = vmatpush1.msra.mxu0 0.0
        %1102 = vmatprep.subr.mxu0 0.0
        %1103 = vmatpush1.msra.mxu0 0.0
        %1104 = vmatprep.subr.mxu0 0.0
        %1105 = vmatpush1.msra.mxu0 0.0
        %1106 = vmatprep.mubr.f32.mxu0 0.0
        %1107 = vmatmul.mubr.f32.gmra.mrb[0].mxu0 %v1036
        %v1108 = vpop.f32.mrb[0].mxu0
        %v1109 = vadd.f32 0.0, %v1108
        %v1110 = vpop.f32.mrb[0].mxu0
        %v1111 = vadd.f32 0.0, %v1110
        %1112 = vdwg.mxu0
        %v1113 = vadd.f32 %v1017, %v1109
        %v1114 = vadd.f32 %v1018, %v1111
        %1115 = vrot.lane.b32.xlu0 %v582, 127
        %v1116 = vpop.permute.xlu0 %1115
        %1117 = vrot.lane.b32.xlu0 %v603, 127
        %v1118 = vpop.permute.xlu0 %1117
        %vm1119 = vcmp.lt.s32.totalorder %v610, 127
        %v1120 = vsel %vm1119, %v1116, %v1118
        %v1121 = vsel %vm1119, %v1118, %v1116
        %s1122 = scalar_lea.vmem %s4, 10
        %v1123 = vld [vmem:[%s1122] sm:$0x3]
        %v1125 = vlaneseq
        %v1126 = vshrl.u32 %v1125, 7
        %v1127 = vsub.s32 0, %v1126
        %v1128 = vrot.slane %v1123, %v1127
        %v1129 = vlaneseq
        %v1130 = vshrl.u32 %v1129, 7
        %v1131 = vsub.s32 1, %v1130
        %v1132 = vrot.slane %v1123, %v1131
        %v1135 = vmul.f32 %v1120, %v1128
        %v1136 = vmul.f32 %v1121, %v1132
        %v1138 = vsel %vm650, %v598, 0
        %v1141 = vsel %vm467, %v1135, 0
        %v1144 = vsel %vm467, %v1136, 0
        %1146 = vmatprep.subr.mxu0 %v1144
        %1147 = vmatpush1.msra.mxu0 %v1141
        %1148 = vmatprep.subr.mxu0 0.0
        %1149 = vmatpush1.msra.mxu0 0.0
        %1150 = vmatprep.subr.mxu0 0.0
        %1151 = vmatpush1.msra.mxu0 0.0
        %1152 = vmatprep.subr.mxu0 0.0
        %1153 = vmatpush1.msra.mxu0 0.0
        %1154 = vmatprep.subr.mxu0 0.0
        %1155 = vmatpush1.msra.mxu0 0.0
        %1156 = vmatprep.subr.mxu0 0.0
        %1157 = vmatpush1.msra.mxu0 0.0
        %1158 = vmatprep.subr.mxu0 0.0
        %1159 = vmatpush1.msra.mxu0 0.0
        %1160 = vmatprep.subr.mxu0 0.0
        %1161 = vmatpush1.msra.mxu0 0.0
        %1162 = vmatprep.subr.mxu0 0.0
        %1163 = vmatpush1.msra.mxu0 0.0
        %1164 = vmatprep.subr.mxu0 0.0
        %1165 = vmatpush1.msra.mxu0 0.0
        %1166 = vmatprep.subr.mxu0 0.0
        %1167 = vmatpush1.msra.mxu0 0.0
        %1168 = vmatprep.subr.mxu0 0.0
        %1169 = vmatpush1.msra.mxu0 0.0
        %1170 = vmatprep.subr.mxu0 0.0
        %1171 = vmatpush1.msra.mxu0 0.0
        %1172 = vmatprep.subr.mxu0 0.0
        %1173 = vmatpush1.msra.mxu0 0.0
        %1174 = vmatprep.subr.mxu0 0.0
        %1175 = vmatpush1.msra.mxu0 0.0
        %1176 = vmatprep.subr.mxu0 0.0
        %1177 = vmatpush1.msra.mxu0 0.0
        %1178 = vmatprep.subr.mxu0 0.0
        %1179 = vmatpush1.msra.mxu0 0.0
        %1180 = vmatprep.subr.mxu0 0.0
        %1181 = vmatpush1.msra.mxu0 0.0
        %1182 = vmatprep.subr.mxu0 0.0
        %1183 = vmatpush1.msra.mxu0 0.0
        %1184 = vmatprep.subr.mxu0 0.0
        %1185 = vmatpush1.msra.mxu0 0.0
        %1186 = vmatprep.subr.mxu0 0.0
        %1187 = vmatpush1.msra.mxu0 0.0
        %1188 = vmatprep.subr.mxu0 0.0
        %1189 = vmatpush1.msra.mxu0 0.0
        %1190 = vmatprep.subr.mxu0 0.0
        %1191 = vmatpush1.msra.mxu0 0.0
        %1192 = vmatprep.subr.mxu0 0.0
        %1193 = vmatpush1.msra.mxu0 0.0
        %1194 = vmatprep.subr.mxu0 0.0
        %1195 = vmatpush1.msra.mxu0 0.0
        %1196 = vmatprep.subr.mxu0 0.0
        %1197 = vmatpush1.msra.mxu0 0.0
        %1198 = vmatprep.subr.mxu0 0.0
        %1199 = vmatpush1.msra.mxu0 0.0
        %1200 = vmatprep.subr.mxu0 0.0
        %1201 = vmatpush1.msra.mxu0 0.0
        %1202 = vmatprep.subr.mxu0 0.0
        %1203 = vmatpush1.msra.mxu0 0.0
        %1204 = vmatprep.subr.mxu0 0.0
        %1205 = vmatpush1.msra.mxu0 0.0
        %1206 = vmatprep.subr.mxu0 0.0
        %1207 = vmatpush1.msra.mxu0 0.0
        %1208 = vmatprep.subr.mxu0 0.0
        %1209 = vmatpush1.msra.mxu0 0.0
        %1210 = vmatprep.mubr.f32.mxu0 0.0
        %1211 = vmatmul.mubr.f32.gmra.mrb[0].mxu0 %v1138
        %v1212 = vpop.f32.mrb[0].mxu0
        %v1213 = vadd.f32 0.0, %v1212
        %v1214 = vpop.f32.mrb[0].mxu0
        %v1215 = vadd.f32 0.0, %v1214
        %1216 = vdwg.mxu0
        %v1217 = vadd.f32 %v1113, %v1213
        %v1218 = vadd.f32 %v1114, %v1215
        %1219 = vrot.lane.b32.xlu0 %v582, 113
        %v1220 = vpop.permute.xlu0 %1219
        %1221 = vrot.lane.b32.xlu0 %v603, 113
        %v1222 = vpop.permute.xlu0 %1221
        %vm1223 = vcmp.lt.s32.totalorder %v610, 113
        %v1224 = vsel %vm1223, %v1220, %v1222
        %v1225 = vsel %vm1223, %v1222, %v1220
        %s1226 = scalar_lea.vmem %s4, 12
        %v1227 = vld [vmem:[%s1226] sm:$0x3]
        %v1229 = vlaneseq
        %v1230 = vshrl.u32 %v1229, 7
        %v1231 = vsub.s32 0, %v1230
        %v1232 = vrot.slane %v1227, %v1231
        %v1233 = vlaneseq
        %v1234 = vshrl.u32 %v1233, 7
        %v1235 = vsub.s32 1, %v1234
        %v1236 = vrot.slane %v1227, %v1235
        %v1239 = vmul.f32 %v1224, %v1232
        %v1240 = vmul.f32 %v1225, %v1236
        %v1242 = vsel %vm650, %v599, 0
        %v1245 = vsel %vm467, %v1239, 0
        %v1248 = vsel %vm467, %v1240, 0
        %1250 = vmatprep.subr.mxu0 %v1248
        %1251 = vmatpush1.msra.mxu0 %v1245
        %1252 = vmatprep.subr.mxu0 0.0
        %1253 = vmatpush1.msra.mxu0 0.0
        %1254 = vmatprep.subr.mxu0 0.0
        %1255 = vmatpush1.msra.mxu0 0.0
        %1256 = vmatprep.subr.mxu0 0.0
        %1257 = vmatpush1.msra.mxu0 0.0
        %1258 = vmatprep.subr.mxu0 0.0
        %1259 = vmatpush1.msra.mxu0 0.0
        %1260 = vmatprep.subr.mxu0 0.0
        %1261 = vmatpush1.msra.mxu0 0.0
        %1262 = vmatprep.subr.mxu0 0.0
        %1263 = vmatpush1.msra.mxu0 0.0
        %1264 = vmatprep.subr.mxu0 0.0
        %1265 = vmatpush1.msra.mxu0 0.0
        %1266 = vmatprep.subr.mxu0 0.0
        %1267 = vmatpush1.msra.mxu0 0.0
        %1268 = vmatprep.subr.mxu0 0.0
        %1269 = vmatpush1.msra.mxu0 0.0
        %1270 = vmatprep.subr.mxu0 0.0
        %1271 = vmatpush1.msra.mxu0 0.0
        %1272 = vmatprep.subr.mxu0 0.0
        %1273 = vmatpush1.msra.mxu0 0.0
        %1274 = vmatprep.subr.mxu0 0.0
        %1275 = vmatpush1.msra.mxu0 0.0
        %1276 = vmatprep.subr.mxu0 0.0
        %1277 = vmatpush1.msra.mxu0 0.0
        %1278 = vmatprep.subr.mxu0 0.0
        %1279 = vmatpush1.msra.mxu0 0.0
        %1280 = vmatprep.subr.mxu0 0.0
        %1281 = vmatpush1.msra.mxu0 0.0
        %1282 = vmatprep.subr.mxu0 0.0
        %1283 = vmatpush1.msra.mxu0 0.0
        %1284 = vmatprep.subr.mxu0 0.0
        %1285 = vmatpush1.msra.mxu0 0.0
        %1286 = vmatprep.subr.mxu0 0.0
        %1287 = vmatpush1.msra.mxu0 0.0
        %1288 = vmatprep.subr.mxu0 0.0
        %1289 = vmatpush1.msra.mxu0 0.0
        %1290 = vmatprep.subr.mxu0 0.0
        %1291 = vmatpush1.msra.mxu0 0.0
        %1292 = vmatprep.subr.mxu0 0.0
        %1293 = vmatpush1.msra.mxu0 0.0
        %1294 = vmatprep.subr.mxu0 0.0
        %1295 = vmatpush1.msra.mxu0 0.0
        %1296 = vmatprep.subr.mxu0 0.0
        %1297 = vmatpush1.msra.mxu0 0.0
        %1298 = vmatprep.subr.mxu0 0.0
        %1299 = vmatpush1.msra.mxu0 0.0
        %1300 = vmatprep.subr.mxu0 0.0
        %1301 = vmatpush1.msra.mxu0 0.0
        %1302 = vmatprep.subr.mxu0 0.0
        %1303 = vmatpush1.msra.mxu0 0.0
        %1304 = vmatprep.subr.mxu0 0.0
        %1305 = vmatpush1.msra.mxu0 0.0
        %1306 = vmatprep.subr.mxu0 0.0
        %1307 = vmatpush1.msra.mxu0 0.0
        %1308 = vmatprep.subr.mxu0 0.0
        %1309 = vmatpush1.msra.mxu0 0.0
        %1310 = vmatprep.subr.mxu0 0.0
        %1311 = vmatpush1.msra.mxu0 0.0
        %1312 = vmatprep.subr.mxu0 0.0
        %1313 = vmatpush1.msra.mxu0 0.0
        %1314 = vmatprep.mubr.f32.mxu0 0.0
        %1315 = vmatmul.mubr.f32.gmra.mrb[0].mxu0 %v1242
        %v1316 = vpop.f32.mrb[0].mxu0
        %v1317 = vadd.f32 0.0, %v1316
        %v1318 = vpop.f32.mrb[0].mxu0
        %v1319 = vadd.f32 0.0, %v1318
        %1320 = vdwg.mxu0
        %v1321 = vadd.f32 %v1217, %v1317
        %v1322 = vadd.f32 %v1218, %v1319
        %1323 = vrot.lane.b32.xlu0 %v582, 112
        %v1324 = vpop.permute.xlu0 %1323
        %1325 = vrot.lane.b32.xlu0 %v603, 112
        %v1326 = vpop.permute.xlu0 %1325
        %vm1327 = vcmp.lt.s32.totalorder %v610, 112
        %v1328 = vsel %vm1327, %v1324, %v1326
        %v1329 = vsel %vm1327, %v1326, %v1324
        %s1330 = scalar_lea.vmem %s4, 14
        %v1331 = vld [vmem:[%s1330] sm:$0x3]
        %v1333 = vlaneseq
        %v1334 = vshrl.u32 %v1333, 7
        %v1335 = vsub.s32 0, %v1334
        %v1336 = vrot.slane %v1331, %v1335
        %v1337 = vlaneseq
        %v1338 = vshrl.u32 %v1337, 7
        %v1339 = vsub.s32 1, %v1338
        %v1340 = vrot.slane %v1331, %v1339
        %v1343 = vmul.f32 %v1328, %v1336
        %v1344 = vmul.f32 %v1329, %v1340
        %v1346 = vsel %vm650, %v600, 0
        %v1349 = vsel %vm467, %v1343, 0
        %v1352 = vsel %vm467, %v1344, 0
        %1354 = vmatprep.subr.mxu0 %v1352
        %1355 = vmatpush1.msra.mxu0 %v1349
        %1356 = vmatprep.subr.mxu0 0.0
        %1357 = vmatpush1.msra.mxu0 0.0
        %1358 = vmatprep.subr.mxu0 0.0
        %1359 = vmatpush1.msra.mxu0 0.0
        %1360 = vmatprep.subr.mxu0 0.0
        %1361 = vmatpush1.msra.mxu0 0.0
        %1362 = vmatprep.subr.mxu0 0.0
        %1363 = vmatpush1.msra.mxu0 0.0
        %1364 = vmatprep.subr.mxu0 0.0
        %1365 = vmatpush1.msra.mxu0 0.0
        %1366 = vmatprep.subr.mxu0 0.0
        %1367 = vmatpush1.msra.mxu0 0.0
        %1368 = vmatprep.subr.mxu0 0.0
        %1369 = vmatpush1.msra.mxu0 0.0
        %1370 = vmatprep.subr.mxu0 0.0
        %1371 = vmatpush1.msra.mxu0 0.0
        %1372 = vmatprep.subr.mxu0 0.0
        %1373 = vmatpush1.msra.mxu0 0.0
        %1374 = vmatprep.subr.mxu0 0.0
        %1375 = vmatpush1.msra.mxu0 0.0
        %1376 = vmatprep.subr.mxu0 0.0
        %1377 = vmatpush1.msra.mxu0 0.0
        %1378 = vmatprep.subr.mxu0 0.0
        %1379 = vmatpush1.msra.mxu0 0.0
        %1380 = vmatprep.subr.mxu0 0.0
        %1381 = vmatpush1.msra.mxu0 0.0
        %1382 = vmatprep.subr.mxu0 0.0
        %1383 = vmatpush1.msra.mxu0 0.0
        %1384 = vmatprep.subr.mxu0 0.0
        %1385 = vmatpush1.msra.mxu0 0.0
        %1386 = vmatprep.subr.mxu0 0.0
        %1387 = vmatpush1.msra.mxu0 0.0
        %1388 = vmatprep.subr.mxu0 0.0
        %1389 = vmatpush1.msra.mxu0 0.0
        %1390 = vmatprep.subr.mxu0 0.0
        %1391 = vmatpush1.msra.mxu0 0.0
        %1392 = vmatprep.subr.mxu0 0.0
        %1393 = vmatpush1.msra.mxu0 0.0
        %1394 = vmatprep.subr.mxu0 0.0
        %1395 = vmatpush1.msra.mxu0 0.0
        %1396 = vmatprep.subr.mxu0 0.0
        %1397 = vmatpush1.msra.mxu0 0.0
        %1398 = vmatprep.subr.mxu0 0.0
        %1399 = vmatpush1.msra.mxu0 0.0
        %1400 = vmatprep.subr.mxu0 0.0
        %1401 = vmatpush1.msra.mxu0 0.0
        %1402 = vmatprep.subr.mxu0 0.0
        %1403 = vmatpush1.msra.mxu0 0.0
        %1404 = vmatprep.subr.mxu0 0.0
        %1405 = vmatpush1.msra.mxu0 0.0
        %1406 = vmatprep.subr.mxu0 0.0
        %1407 = vmatpush1.msra.mxu0 0.0
        %1408 = vmatprep.subr.mxu0 0.0
        %1409 = vmatpush1.msra.mxu0 0.0
        %1410 = vmatprep.subr.mxu0 0.0
        %1411 = vmatpush1.msra.mxu0 0.0
        %1412 = vmatprep.subr.mxu0 0.0
        %1413 = vmatpush1.msra.mxu0 0.0
        %1414 = vmatprep.subr.mxu0 0.0
        %1415 = vmatpush1.msra.mxu0 0.0
        %1416 = vmatprep.subr.mxu0 0.0
        %1417 = vmatpush1.msra.mxu0 0.0
        %1418 = vmatprep.mubr.f32.mxu0 0.0
        %1419 = vmatmul.mubr.f32.gmra.mrb[0].mxu0 %v1346
        %v1420 = vpop.f32.mrb[0].mxu0
        %v1421 = vadd.f32 0.0, %v1420
        %v1422 = vpop.f32.mrb[0].mxu0
        %v1423 = vadd.f32 0.0, %v1422
        %1424 = vdwg.mxu0
        %v1425 = vadd.f32 %v1321, %v1421
        %v1426 = vadd.f32 %v1322, %v1423
        %1427 = vrot.lane.b32.xlu0 %v582, 111
        %v1428 = vpop.permute.xlu0 %1427
        %1429 = vrot.lane.b32.xlu0 %v603, 111
        %v1430 = vpop.permute.xlu0 %1429
        %vm1431 = vcmp.lt.s32.totalorder %v610, 111
        %v1432 = vsel %vm1431, %v1428, %v1430
        %v1433 = vsel %vm1431, %v1430, %v1428
        %s1434 = scalar_lea.vmem %s4, 16
        %v1435 = vld [vmem:[%s1434] sm:$0x3]
        %v1437 = vlaneseq
        %v1438 = vshrl.u32 %v1437, 7
        %v1439 = vsub.s32 0, %v1438
        %v1440 = vrot.slane %v1435, %v1439
        %v1441 = vlaneseq
        %v1442 = vshrl.u32 %v1441, 7
        %v1443 = vsub.s32 1, %v1442
        %v1444 = vrot.slane %v1435, %v1443
        %v1447 = vmul.f32 %v1432, %v1440
        %v1448 = vmul.f32 %v1433, %v1444
        %v1450 = vsel %vm650, %v601, 0
        %v1453 = vsel %vm467, %v1447, 0
        %v1456 = vsel %vm467, %v1448, 0
        %1458 = vmatprep.subr.mxu0 %v1456
        %1459 = vmatpush1.msra.mxu0 %v1453
        %1460 = vmatprep.subr.mxu0 0.0
        %1461 = vmatpush1.msra.mxu0 0.0
        %1462 = vmatprep.subr.mxu0 0.0
        %1463 = vmatpush1.msra.mxu0 0.0
        %1464 = vmatprep.subr.mxu0 0.0
        %1465 = vmatpush1.msra.mxu0 0.0
        %1466 = vmatprep.subr.mxu0 0.0
        %1467 = vmatpush1.msra.mxu0 0.0
        %1468 = vmatprep.subr.mxu0 0.0
        %1469 = vmatpush1.msra.mxu0 0.0
        %1470 = vmatprep.subr.mxu0 0.0
        %1471 = vmatpush1.msra.mxu0 0.0
        %1472 = vmatprep.subr.mxu0 0.0
        %1473 = vmatpush1.msra.mxu0 0.0
        %1474 = vmatprep.subr.mxu0 0.0
        %1475 = vmatpush1.msra.mxu0 0.0
        %1476 = vmatprep.subr.mxu0 0.0
        %1477 = vmatpush1.msra.mxu0 0.0
        %1478 = vmatprep.subr.mxu0 0.0
        %1479 = vmatpush1.msra.mxu0 0.0
        %1480 = vmatprep.subr.mxu0 0.0
        %1481 = vmatpush1.msra.mxu0 0.0
        %1482 = vmatprep.subr.mxu0 0.0
        %1483 = vmatpush1.msra.mxu0 0.0
        %1484 = vmatprep.subr.mxu0 0.0
        %1485 = vmatpush1.msra.mxu0 0.0
        %1486 = vmatprep.subr.mxu0 0.0
        %1487 = vmatpush1.msra.mxu0 0.0
        %1488 = vmatprep.subr.mxu0 0.0
        %1489 = vmatpush1.msra.mxu0 0.0
        %1490 = vmatprep.subr.mxu0 0.0
        %1491 = vmatpush1.msra.mxu0 0.0
        %1492 = vmatprep.subr.mxu0 0.0
        %1493 = vmatpush1.msra.mxu0 0.0
        %1494 = vmatprep.subr.mxu0 0.0
        %1495 = vmatpush1.msra.mxu0 0.0
        %1496 = vmatprep.subr.mxu0 0.0
        %1497 = vmatpush1.msra.mxu0 0.0
        %1498 = vmatprep.subr.mxu0 0.0
        %1499 = vmatpush1.msra.mxu0 0.0
        %1500 = vmatprep.subr.mxu0 0.0
        %1501 = vmatpush1.msra.mxu0 0.0
        %1502 = vmatprep.subr.mxu0 0.0
        %1503 = vmatpush1.msra.mxu0 0.0
        %1504 = vmatprep.subr.mxu0 0.0
        %1505 = vmatpush1.msra.mxu0 0.0
        %1506 = vmatprep.subr.mxu0 0.0
        %1507 = vmatpush1.msra.mxu0 0.0
        %1508 = vmatprep.subr.mxu0 0.0
        %1509 = vmatpush1.msra.mxu0 0.0
        %1510 = vmatprep.subr.mxu0 0.0
        %1511 = vmatpush1.msra.mxu0 0.0
        %1512 = vmatprep.subr.mxu0 0.0
        %1513 = vmatpush1.msra.mxu0 0.0
        %1514 = vmatprep.subr.mxu0 0.0
        %1515 = vmatpush1.msra.mxu0 0.0
        %1516 = vmatprep.subr.mxu0 0.0
        %1517 = vmatpush1.msra.mxu0 0.0
        %1518 = vmatprep.subr.mxu0 0.0
        %1519 = vmatpush1.msra.mxu0 0.0
        %1520 = vmatprep.subr.mxu0 0.0
        %1521 = vmatpush1.msra.mxu0 0.0
        %1522 = vmatprep.mubr.f32.mxu0 0.0
        %1523 = vmatmul.mubr.f32.gmra.mrb[0].mxu0 %v1450
        %v1524 = vpop.f32.mrb[0].mxu0
        %v1525 = vadd.f32 0.0, %v1524
        %v1526 = vpop.f32.mrb[0].mxu0
        %v1527 = vadd.f32 0.0, %v1526
        %1528 = vdwg.mxu0
        %v1529 = vadd.f32 %v1425, %v1525
        %v1530 = vadd.f32 %v1426, %v1527
        %v1531 = vld [vmem:[%s3] sm:$0xff]
        %1533 = vset.pattern.permute.xlu0 0
        %1534 = vperm.xlu0 %1533, %v1531
        %v1535 = vpop.permute.xlu0 %1534
        %v1537 = vadd.f32 %v1529, %v1535
        %v1538 = vadd.f32 %v1530, %v1535
        %1539 = vst [vmem:[%s356] sm:$0xff] %v1537
        %1540 = vst [vmem:[%s356 + $0x8] sm:$0xff] %v1538
        %p1541 = scmp.lt.s32.totalorder %s24, 1
        %s1542 = scalar_select %p1541, %s24, 1
        %s1543 = smul.addr %s1542, 2
        %s1544 = smul.addr %s1543, 8
        %s1545 = scalar_lea.vmem %s8, %s1544
        // Predicated region
        $region53: #{spectral_norm_conv_forward.1} parent=51 // pred_check
          %p1546 = pneg %p215
        $region54: #{spectral_norm_conv_forward.1} parent=51 // pred_check_branch
          %1548 = sbr.rel (%p1546) target = $region56
        $region55: #{spectral_norm_conv_forward.1} parent=51 // pred_region
          _
        $region56: #{spectral_norm_conv_forward.1} parent=51 // pred_fallthru
          _
        // Predicated region
        $region57: #{spectral_norm_conv_forward.1} parent=51 // pred_check
          %p1549 = pneg %p236
        $region58: #{spectral_norm_conv_forward.1} parent=51 // pred_check_branch
          %1551 = sbr.rel (%p1549) target = $region60
        $region59: #{spectral_norm_conv_forward.1} parent=51 // pred_region
          %s1553 = ssub.s32 16, 16
          %1554 = vsyncadd [#allocation3], %s1553
          %s1556 = sshll.u32 [#allocation2], 4
          %s1557 = int_to_ptr.vmem [resolvable:$true] %s1556
          %1559 = dma.vmem_to_hbm [thread:$0]  %s1557, 16, %s9, [#allocation3]
        $region60: #{spectral_norm_conv_forward.1} parent=51 // pred_fallthru
          _
        // Predicated region
        $region61: #{spectral_norm_conv_forward.1} parent=51 // pred_check
          %p1560 = pneg %p257
        $region62: #{spectral_norm_conv_forward.1} parent=51 // pred_check_branch
          %1562 = sbr.rel (%p1560) target = $region64
        $region63: #{spectral_norm_conv_forward.1} parent=51 // pred_region
          %s1564 = ssub.s32 16, 16
          %1565 = vsyncadd [#allocation5], %s1564
          %s1567 = sshll.u32 [#allocation4], 4
          %s1568 = int_to_ptr.vmem [resolvable:$true] %s1567
          %1570 = dma.vmem_to_hbm [thread:$0]  %s1568, 16, %s10, [#allocation5]
        $region64: #{spectral_norm_conv_forward.1} parent=51 // pred_fallthru
          _
        // Predicated region
        $region65: #{spectral_norm_conv_forward.1} parent=51 // pred_check
          %p1571 = pneg %p236
        $region66: #{spectral_norm_conv_forward.1} parent=51 // pred_check_branch
          %1573 = sbr.rel (%p1571) target = $region68
        $region67: #{spectral_norm_conv_forward.1} parent=51 // pred_region
          %1574 = dma.done [#allocation3], 16
        $region68: #{spectral_norm_conv_forward.1} parent=51 // pred_fallthru
          _
        // Predicated region
        $region69: #{spectral_norm_conv_forward.1} parent=51 // pred_check
          %p1575 = pneg %p257
        $region70: #{spectral_norm_conv_forward.1} parent=51 // pred_check_branch
          %1577 = sbr.rel (%p1575) target = $region72
        $region71: #{spectral_norm_conv_forward.1} parent=51 // pred_region
          %1578 = dma.done [#allocation5], 16
        $region72: #{spectral_norm_conv_forward.1} parent=51 // pred_fallthru
          _
      $region52: #{spectral_norm_conv_forward.1} parent=5 // pred_fallthru
        _
      %p1579 = scmp.le.s32.totalorder 2, %s19
      // Predicated region
      $region73: #{spectral_norm_conv_forward.1} parent=5 // pred_check
        %p1580 = pneg %p1579
      $region74: #{spectral_norm_conv_forward.1} parent=5 // pred_check_branch
        %1582 = sbr.rel (%p1580) target = $region76
      $region75: #{spectral_norm_conv_forward.1} parent=5 // pred_region
        %s1583 = ssub.s32 %s19, 2
        // Predicated region
        $region77: #{spectral_norm_conv_forward.1} parent=75 // pred_check
          %p1584 = pneg %p221
        $region78: #{spectral_norm_conv_forward.1} parent=75 // pred_check_branch
          %1586 = sbr.rel (%p1584) target = $region80
        $region79: #{spectral_norm_conv_forward.1} parent=75 // pred_region
          %p1587 = scmp.lt.s32.totalorder %s25, 1
          %s1588 = scalar_select %p1587, %s25, 1
          %s1589 = smul.addr %s1588, 2
          %s1590 = smul.addr %s1589, 8
          %s1591 = scalar_lea.vmem %s8, %s1590
        $region80: #{spectral_norm_conv_forward.1} parent=75 // pred_fallthru
          _
      $region76: #{spectral_norm_conv_forward.1} parent=5 // pred_fallthru
        _
    $region6: #{spectral_norm_conv_forward.1} parent=1 // loop_footer
      %s23 = sadd.s32 1, %s19
    $region7: #{spectral_norm_conv_forward.1} parent=1 // loop_footer_branch
      %18 = sbr.rel target = $region3
    $region8: #{spectral_norm_conv_forward.1} parent=1 // loop_exit
      _
    %1592 = vsyncpa [#allocation3], 1
    %s1593 = scalar_lea.sflag [#allocation3], 1
    %1594 = vsyncpa %s1593, 1
    %1595 = vsyncpa [#allocation5], 1

</llo_original>
